<compile_context>
chip_gen: v6e
topology: v6e:2x2x1
jax: 0.10.0
libtpu: 0.0.40
codegen_flags: <defaults>
</compile_context>

<pallas_src>
import functools
import math

import jax
import jax.numpy as jnp
from jax.experimental import pallas as pl
from jax.experimental.pallas import tpu as pltpu


def _round_up(n, m):
    return (n + m - 1) // m * m


# ----------------------------------------------------------------------------
# Pallas kernel: fused strided 3x3 conv (stride 2, pad 1) as 9 accumulated GEMMs
# ----------------------------------------------------------------------------
def _downsample_conv_kernel(xee_ref, xeo_ref, xoe_ref, xoo_ref, w_ref, b_ref,
                            o_ref, *, hout, wout, cin):
    """Per grid step: one image (all spatial positions) x one Cout tile.

    x??_ref : (1, Hout+1, Wout+1, Cin) bf16 parity planes of the padded input
              (row parity e/o  x  col parity e/o).
    w_ref   : (9, Cin, TN) bf16   — tap-major weight tile.
    b_ref   : (1, TN) f32         — bias tile.
    o_ref   : (1, Hout, Wout, TN) f32.
    """
    tn = o_ref.shape[-1]
    planes = ((xee_ref, xeo_ref), (xoe_ref, xoo_ref))

    acc = jnp.zeros((hout * wout, tn), jnp.float32)
    for i in range(3):          # kernel row tap
        for j in range(3):      # kernel col tap
            src = planes[i % 2][j % 2]
            # unit-stride window: padded-input row 2*ho+i lives at parity
            # plane (i%2), plane-row ho + i//2 (same for columns).
            xs = src[0, i // 2:i // 2 + hout, j // 2:j // 2 + wout, :]
            a = xs.reshape(hout * wout, cin)               # (M, Cin) bf16
            acc = acc + jnp.dot(a, w_ref[i * 3 + j],
                                preferred_element_type=jnp.float32)
    acc = acc + b_ref[...]
    o_ref[0] = acc.reshape(hout, wout, tn).astype(o_ref.dtype)


def downsample_conv(x, w, b):
    """Conv2d(C_in, C_out, k=3, stride=2, padding=1) on NCHW input."""
    B, Cin, H, W = x.shape
    Cout = w.shape[0]
    Hout = (H + 2 - 3) // 2 + 1
    Wout = (W + 2 - 3) // 2 + 1
    Hr, Wr = Hout + 1, Wout + 1

    # --- host-side layout glue (no FLOPs, no data blow-up) -------------------
    # NCHW -> NHWC, pad spatially by 1, cast to bf16 for the MXU.
    xp = jnp.pad(x.transpose(0, 2, 3, 1),
                 ((0, 0), (1, 1), (1, 1), (0, 0))).astype(jnp.bfloat16)
    # Space-to-depth parity split: 4 planes, total bytes == padded input bytes.
    planes = []
    for rp in (0, 1):
        for cp in (0, 1):
            pln = xp[:, rp::2, cp::2, :]
            ph, pw = pln.shape[1], pln.shape[2]
            if ph != Hr or pw != Wr:   # only triggers for odd H/W
                pln = jnp.pad(pln, ((0, 0), (0, Hr - ph), (0, Wr - pw), (0, 0)))
            planes.append(pln)

    # Weight/bias: pad Cout to a multiple of 128 for lane-dense stores.
    Cout_p = _round_up(Cout, 128)
    TN = 128
    wt = jnp.transpose(w, (2, 3, 1, 0)).reshape(9, Cin, Cout)      # wt[t,c,o]=w[o,c,i,j]
    if Cout_p != Cout:
        wt = jnp.pad(wt, ((0, 0), (0, 0), (0, Cout_p - Cout)))
    wt = wt.astype(jnp.bfloat16)
    bp = jnp.pad(b.astype(jnp.float32), (0, Cout_p - Cout)).reshape(1, Cout_p)

    # --- Pallas call ----------------------------------------------------------
    grid = (B, Cout_p // TN)
    plane_spec = pl.BlockSpec((1, Hr, Wr, Cin), lambda bb, nn: (bb, 0, 0, 0))

    out = pl.pallas_call(
        functools.partial(_downsample_conv_kernel,
                          hout=Hout, wout=Wout, cin=Cin),
        out_shape=jax.ShapeDtypeStruct((B, Hout, Wout, Cout_p), jnp.float32),
        grid_spec=pltpu.PrefetchScalarGridSpec(
            num_scalar_prefetch=0,
            grid=grid,
            in_specs=[plane_spec, plane_spec, plane_spec, plane_spec,
                      pl.BlockSpec((9, Cin, TN), lambda bb, nn: (0, 0, nn)),
                      pl.BlockSpec((1, TN), lambda bb, nn: (0, nn))],
            out_specs=pl.BlockSpec((1, Hout, Wout, TN),
                                   lambda bb, nn: (bb, 0, 0, nn)),
        ),
        compiler_params=pltpu.CompilerParams(
            dimension_semantics=("parallel", "parallel"),
            vmem_limit_bytes=32 * 1024 * 1024,
        ),
    )(*planes, wt, bp)

    out = out[..., :Cout]                    # drop channel padding (no-op if Cout%128==0)
    return out.transpose(0, 3, 1, 2)         # NHWC -> NCHW


# ----------------------------------------------------------------------------
# Module-equivalent forward: Downsample(num_channels).forward(x, t) -> conv(x)
# ----------------------------------------------------------------------------
@jax.jit
def downsample_forward(params, x, t):
    del t  # unused, exactly as in the PyTorch module
    return downsample_conv(x, params["w"], params["b"])


def init_downsample(key, num_channels):
    k1, k2 = jax.random.split(key)
    bound = 1.0 / math.sqrt(num_channels * 9)
    w = jax.random.uniform(k1, (num_channels, num_channels, 3, 3), jnp.float32,
                           minval=-bound, maxval=bound)
    b = jax.random.uniform(k2, (num_channels,), jnp.float32,
                           minval=-bound, maxval=bound)
    return {"w": w, "b": b}


# ----------------------------------------------------------------------------
if __name__ == "__main__":
    B, C, H, W = 2, 128, 16, 16

    key = jax.random.PRNGKey(0)
    k_params, k_img, k_t = jax.random.split(key, 3)
    params = init_downsample(k_params, C)
    x = jax.random.normal(k_img, (B, C, H, W), jnp.float32)
    t = jax.random.uniform(k_t, (B,), jnp.float32, minval=0.0, maxval=1000.0)

    out = downsample_forward(params, x, t)
    out = jax.block_until_ready(out)

    assert out.shape == (B, C, H // 2, W // 2), out.shape
    assert bool(jnp.all(jnp.isfinite(out)))

    # Correctness check against XLA's conv on the same bf16-rounded operands
    # (differences are f32 accumulation-order only).
    xb = x.astype(jnp.bfloat16).astype(jnp.float32)
    wb = params["w"].astype(jnp.bfloat16).astype(jnp.float32)
    ref = jax.lax.conv_general_dilated(
        xb, wb, window_strides=(2, 2), padding=((1, 1), (1, 1)),
        dimension_numbers=("NCHW", "OIHW", "NCHW"),
    ) + params["b"][None, :, None, None]
    assert bool(jnp.allclose(out, ref, atol=3e-3, rtol=3e-3)), float(
        jnp.max(jnp.abs(out - ref)))

    print("KERNEL_OK")
</pallas_src>

<mosaic_0001>
module attributes {stable_mosaic.version = 11 : i64} {
  func.func @_downsample_conv_kernel(%arg0: i32, %arg1: i32, %arg2: memref<1x9x9x128xbf16, #tpu.memory_space<vmem>>, %arg3: memref<1x9x9x128xbf16, #tpu.memory_space<vmem>>, %arg4: memref<1x9x9x128xbf16, #tpu.memory_space<vmem>>, %arg5: memref<1x9x9x128xbf16, #tpu.memory_space<vmem>>, %arg6: memref<9x128x128xbf16, #tpu.memory_space<vmem>>, %arg7: memref<1x128xf32, #tpu.memory_space<vmem>>, %arg8: memref<1x8x8x128xf32, #tpu.memory_space<vmem>>) attributes {dimension_semantics = [#tpu.dimension_semantics<parallel>, #tpu.dimension_semantics<parallel>], iteration_bounds = array<i64: 2, 1>, scalar_prefetch = 0 : i64, scratch_operands = 0 : i64, tpu.core_type = #tpu.core_type<tc>, window_params = [{transform_indices = @transform_0, window_bounds = array<i64: 1, 9, 9, 128>}, {transform_indices = @transform_1, window_bounds = array<i64: 1, 9, 9, 128>}, {transform_indices = @transform_2, window_bounds = array<i64: 1, 9, 9, 128>}, {transform_indices = @transform_3, window_bounds = array<i64: 1, 9, 9, 128>}, {transform_indices = @transform_4, window_bounds = array<i64: 9, 128, 128>}, {transform_indices = @transform_5, window_bounds = array<i64: 1, 128>}, {transform_indices = @transform_6, window_bounds = array<i64: 1, 8, 8, 128>}]} {
    %cst = arith.constant 0.000000e+00 : f32
    %0 = vector.broadcast %cst : f32 to vector<64x128xf32>
    %c0 = arith.constant 0 : index
    %c0_0 = arith.constant 0 : index
    %c0_1 = arith.constant 0 : index
    %c0_2 = arith.constant 0 : index
    %1 = vector.load %arg2[%c0, %c0_0, %c0_1, %c0_2] : memref<1x9x9x128xbf16, #tpu.memory_space<vmem>>, vector<1x8x8x128xbf16>
    %2 = vector.shape_cast %1 : vector<1x8x8x128xbf16> to vector<8x8x128xbf16>
    %3 = vector.shape_cast %2 : vector<8x8x128xbf16> to vector<64x128xbf16>
    %c0_3 = arith.constant 0 : index
    %c0_4 = arith.constant 0 : index
    %c0_5 = arith.constant 0 : index
    %4 = vector.load %arg6[%c0_3, %c0_4, %c0_5] : memref<9x128x128xbf16, #tpu.memory_space<vmem>>, vector<1x128x128xbf16>
    %5 = vector.shape_cast %4 : vector<1x128x128xbf16> to vector<128x128xbf16>
    %cst_6 = arith.constant dense<0.000000e+00> : vector<64x128xf32>
    %6 = tpu.matmul %3, %5, %cst_6 {dimension_numbers = #tpu.dot_dimension_numbers<[1], [0], [0], [1], [0, 0, 1, 1], [], []>} : vector<64x128xbf16>, vector<128x128xbf16>, vector<64x128xf32> -> vector<64x128xf32>
    %7 = arith.addf %0, %6 : vector<64x128xf32>
    %c0_7 = arith.constant 0 : index
    %c0_8 = arith.constant 0 : index
    %c0_9 = arith.constant 0 : index
    %c0_10 = arith.constant 0 : index
    %8 = vector.load %arg3[%c0_7, %c0_8, %c0_9, %c0_10] : memref<1x9x9x128xbf16, #tpu.memory_space<vmem>>, vector<1x8x8x128xbf16>
    %9 = vector.shape_cast %8 : vector<1x8x8x128xbf16> to vector<8x8x128xbf16>
    %10 = vector.shape_cast %9 : vector<8x8x128xbf16> to vector<64x128xbf16>
    %c1 = arith.constant 1 : index
    %c0_11 = arith.constant 0 : index
    %c0_12 = arith.constant 0 : index
    %11 = vector.load %arg6[%c1, %c0_11, %c0_12] : memref<9x128x128xbf16, #tpu.memory_space<vmem>>, vector<1x128x128xbf16>
    %12 = vector.shape_cast %11 : vector<1x128x128xbf16> to vector<128x128xbf16>
    %cst_13 = arith.constant dense<0.000000e+00> : vector<64x128xf32>
    %13 = tpu.matmul %10, %12, %cst_13 {dimension_numbers = #tpu.dot_dimension_numbers<[1], [0], [0], [1], [0, 0, 1, 1], [], []>} : vector<64x128xbf16>, vector<128x128xbf16>, vector<64x128xf32> -> vector<64x128xf32>
    %14 = arith.addf %7, %13 : vector<64x128xf32>
    %c0_14 = arith.constant 0 : index
    %c0_15 = arith.constant 0 : index
    %c1_16 = arith.constant 1 : index
    %c0_17 = arith.constant 0 : index
    %15 = vector.load %arg2[%c0_14, %c0_15, %c1_16, %c0_17] : memref<1x9x9x128xbf16, #tpu.memory_space<vmem>>, vector<1x8x8x128xbf16>
    %16 = vector.shape_cast %15 : vector<1x8x8x128xbf16> to vector<8x8x128xbf16>
    %17 = vector.shape_cast %16 : vector<8x8x128xbf16> to vector<64x128xbf16>
    %c2 = arith.constant 2 : index
    %c0_18 = arith.constant 0 : index
    %c0_19 = arith.constant 0 : index
    %18 = vector.load %arg6[%c2, %c0_18, %c0_19] : memref<9x128x128xbf16, #tpu.memory_space<vmem>>, vector<1x128x128xbf16>
    %19 = vector.shape_cast %18 : vector<1x128x128xbf16> to vector<128x128xbf16>
    %cst_20 = arith.constant dense<0.000000e+00> : vector<64x128xf32>
    %20 = tpu.matmul %17, %19, %cst_20 {dimension_numbers = #tpu.dot_dimension_numbers<[1], [0], [0], [1], [0, 0, 1, 1], [], []>} : vector<64x128xbf16>, vector<128x128xbf16>, vector<64x128xf32> -> vector<64x128xf32>
    %21 = arith.addf %14, %20 : vector<64x128xf32>
    %c0_21 = arith.constant 0 : index
    %c0_22 = arith.constant 0 : index
    %c0_23 = arith.constant 0 : index
    %c0_24 = arith.constant 0 : index
    %22 = vector.load %arg4[%c0_21, %c0_22, %c0_23, %c0_24] : memref<1x9x9x128xbf16, #tpu.memory_space<vmem>>, vector<1x8x8x128xbf16>
    %23 = vector.shape_cast %22 : vector<1x8x8x128xbf16> to vector<8x8x128xbf16>
    %24 = vector.shape_cast %23 : vector<8x8x128xbf16> to vector<64x128xbf16>
    %c3 = arith.constant 3 : index
    %c0_25 = arith.constant 0 : index
    %c0_26 = arith.constant 0 : index
    %25 = vector.load %arg6[%c3, %c0_25, %c0_26] : memref<9x128x128xbf16, #tpu.memory_space<vmem>>, vector<1x128x128xbf16>
    %26 = vector.shape_cast %25 : vector<1x128x128xbf16> to vector<128x128xbf16>
    %cst_27 = arith.constant dense<0.000000e+00> : vector<64x128xf32>
    %27 = tpu.matmul %24, %26, %cst_27 {dimension_numbers = #tpu.dot_dimension_numbers<[1], [0], [0], [1], [0, 0, 1, 1], [], []>} : vector<64x128xbf16>, vector<128x128xbf16>, vector<64x128xf32> -> vector<64x128xf32>
    %28 = arith.addf %21, %27 : vector<64x128xf32>
    %c0_28 = arith.constant 0 : index
    %c0_29 = arith.constant 0 : index
    %c0_30 = arith.constant 0 : index
    %c0_31 = arith.constant 0 : index
    %29 = vector.load %arg5[%c0_28, %c0_29, %c0_30, %c0_31] : memref<1x9x9x128xbf16, #tpu.memory_space<vmem>>, vector<1x8x8x128xbf16>
    %30 = vector.shape_cast %29 : vector<1x8x8x128xbf16> to vector<8x8x128xbf16>
    %31 = vector.shape_cast %30 : vector<8x8x128xbf16> to vector<64x128xbf16>
    %c4 = arith.constant 4 : index
    %c0_32 = arith.constant 0 : index
    %c0_33 = arith.constant 0 : index
    %32 = vector.load %arg6[%c4, %c0_32, %c0_33] : memref<9x128x128xbf16, #tpu.memory_space<vmem>>, vector<1x128x128xbf16>
    %33 = vector.shape_cast %32 : vector<1x128x128xbf16> to vector<128x128xbf16>
    %cst_34 = arith.constant dense<0.000000e+00> : vector<64x128xf32>
    %34 = tpu.matmul %31, %33, %cst_34 {dimension_numbers = #tpu.dot_dimension_numbers<[1], [0], [0], [1], [0, 0, 1, 1], [], []>} : vector<64x128xbf16>, vector<128x128xbf16>, vector<64x128xf32> -> vector<64x128xf32>
    %35 = arith.addf %28, %34 : vector<64x128xf32>
    %c0_35 = arith.constant 0 : index
    %c0_36 = arith.constant 0 : index
    %c1_37 = arith.constant 1 : index
    %c0_38 = arith.constant 0 : index
    %36 = vector.load %arg4[%c0_35, %c0_36, %c1_37, %c0_38] : memref<1x9x9x128xbf16, #tpu.memory_space<vmem>>, vector<1x8x8x128xbf16>
    %37 = vector.shape_cast %36 : vector<1x8x8x128xbf16> to vector<8x8x128xbf16>
    %38 = vector.shape_cast %37 : vector<8x8x128xbf16> to vector<64x128xbf16>
    %c5 = arith.constant 5 : index
    %c0_39 = arith.constant 0 : index
    %c0_40 = arith.constant 0 : index
    %39 = vector.load %arg6[%c5, %c0_39, %c0_40] : memref<9x128x128xbf16, #tpu.memory_space<vmem>>, vector<1x128x128xbf16>
    %40 = vector.shape_cast %39 : vector<1x128x128xbf16> to vector<128x128xbf16>
    %cst_41 = arith.constant dense<0.000000e+00> : vector<64x128xf32>
    %41 = tpu.matmul %38, %40, %cst_41 {dimension_numbers = #tpu.dot_dimension_numbers<[1], [0], [0], [1], [0, 0, 1, 1], [], []>} : vector<64x128xbf16>, vector<128x128xbf16>, vector<64x128xf32> -> vector<64x128xf32>
    %42 = arith.addf %35, %41 : vector<64x128xf32>
    %c0_42 = arith.constant 0 : index
    %c1_43 = arith.constant 1 : index
    %c0_44 = arith.constant 0 : index
    %c0_45 = arith.constant 0 : index
    %43 = vector.load %arg2[%c0_42, %c1_43, %c0_44, %c0_45] : memref<1x9x9x128xbf16, #tpu.memory_space<vmem>>, vector<1x8x8x128xbf16>
    %44 = vector.shape_cast %43 : vector<1x8x8x128xbf16> to vector<8x8x128xbf16>
    %45 = vector.shape_cast %44 : vector<8x8x128xbf16> to vector<64x128xbf16>
    %c6 = arith.constant 6 : index
    %c0_46 = arith.constant 0 : index
    %c0_47 = arith.constant 0 : index
    %46 = vector.load %arg6[%c6, %c0_46, %c0_47] : memref<9x128x128xbf16, #tpu.memory_space<vmem>>, vector<1x128x128xbf16>
    %47 = vector.shape_cast %46 : vector<1x128x128xbf16> to vector<128x128xbf16>
    %cst_48 = arith.constant dense<0.000000e+00> : vector<64x128xf32>
    %48 = tpu.matmul %45, %47, %cst_48 {dimension_numbers = #tpu.dot_dimension_numbers<[1], [0], [0], [1], [0, 0, 1, 1], [], []>} : vector<64x128xbf16>, vector<128x128xbf16>, vector<64x128xf32> -> vector<64x128xf32>
    %49 = arith.addf %42, %48 : vector<64x128xf32>
    %c0_49 = arith.constant 0 : index
    %c1_50 = arith.constant 1 : index
    %c0_51 = arith.constant 0 : index
    %c0_52 = arith.constant 0 : index
    %50 = vector.load %arg3[%c0_49, %c1_50, %c0_51, %c0_52] : memref<1x9x9x128xbf16, #tpu.memory_space<vmem>>, vector<1x8x8x128xbf16>
    %51 = vector.shape_cast %50 : vector<1x8x8x128xbf16> to vector<8x8x128xbf16>
    %52 = vector.shape_cast %51 : vector<8x8x128xbf16> to vector<64x128xbf16>
    %c7 = arith.constant 7 : index
    %c0_53 = arith.constant 0 : index
    %c0_54 = arith.constant 0 : index
    %53 = vector.load %arg6[%c7, %c0_53, %c0_54] : memref<9x128x128xbf16, #tpu.memory_space<vmem>>, vector<1x128x128xbf16>
    %54 = vector.shape_cast %53 : vector<1x128x128xbf16> to vector<128x128xbf16>
    %cst_55 = arith.constant dense<0.000000e+00> : vector<64x128xf32>
    %55 = tpu.matmul %52, %54, %cst_55 {dimension_numbers = #tpu.dot_dimension_numbers<[1], [0], [0], [1], [0, 0, 1, 1], [], []>} : vector<64x128xbf16>, vector<128x128xbf16>, vector<64x128xf32> -> vector<64x128xf32>
    %56 = arith.addf %49, %55 : vector<64x128xf32>
    %c0_56 = arith.constant 0 : index
    %c1_57 = arith.constant 1 : index
    %c1_58 = arith.constant 1 : index
    %c0_59 = arith.constant 0 : index
    %57 = vector.load %arg2[%c0_56, %c1_57, %c1_58, %c0_59] : memref<1x9x9x128xbf16, #tpu.memory_space<vmem>>, vector<1x8x8x128xbf16>
    %58 = vector.shape_cast %57 : vector<1x8x8x128xbf16> to vector<8x8x128xbf16>
    %59 = vector.shape_cast %58 : vector<8x8x128xbf16> to vector<64x128xbf16>
    %c8 = arith.constant 8 : index
    %c0_60 = arith.constant 0 : index
    %c0_61 = arith.constant 0 : index
    %60 = vector.load %arg6[%c8, %c0_60, %c0_61] : memref<9x128x128xbf16, #tpu.memory_space<vmem>>, vector<1x128x128xbf16>
    %61 = vector.shape_cast %60 : vector<1x128x128xbf16> to vector<128x128xbf16>
    %cst_62 = arith.constant dense<0.000000e+00> : vector<64x128xf32>
    %62 = tpu.matmul %59, %61, %cst_62 {dimension_numbers = #tpu.dot_dimension_numbers<[1], [0], [0], [1], [0, 0, 1, 1], [], []>} : vector<64x128xbf16>, vector<128x128xbf16>, vector<64x128xf32> -> vector<64x128xf32>
    %63 = arith.addf %56, %62 : vector<64x128xf32>
    %c0_63 = arith.constant 0 : index
    %c0_64 = arith.constant 0 : index
    %64 = vector.load %arg7[%c0_63, %c0_64] : memref<1x128xf32, #tpu.memory_space<vmem>>, vector<1x128xf32>
    %65 = vector.broadcast %64 : vector<1x128xf32> to vector<64x128xf32>
    %66 = arith.addf %63, %65 : vector<64x128xf32>
    %67 = vector.shape_cast %66 : vector<64x128xf32> to vector<8x8x128xf32>
    %c0_65 = arith.constant 0 : index
    %c0_66 = arith.constant 0 : index
    %c0_67 = arith.constant 0 : index
    %c0_68 = arith.constant 0 : index
    %68 = vector.load %arg8[%c0_65, %c0_66, %c0_67, %c0_68] : memref<1x8x8x128xf32, #tpu.memory_space<vmem>>, vector<1x8x8x128xf32>
    %69 = vector.shape_cast %68 : vector<1x8x8x128xf32> to vector<8x8x128xf32>
    %70 = vector.shape_cast %67 : vector<8x8x128xf32> to vector<1x8x8x128xf32>
    tpu.vector_store %arg8[%c0_65, %c0_66, %c0_67, %c0_68], %70 {strides = array<i32>} : memref<1x8x8x128xf32, #tpu.memory_space<vmem>>, vector<1x8x8x128xf32>,
    return
  }
  func.func @transform_0(%arg0: i32, %arg1: i32) -> (i32, i32, i32, i32) {
    %c0_i32 = arith.constant 0 : i32
    %c0_i32_0 = arith.constant 0 : i32
    %c0_i32_1 = arith.constant 0 : i32
    %c0_i32_2 = arith.constant 0 : i32
    return %arg0, %c0_i32, %c0_i32_0, %c0_i32_1 : i32, i32, i32, i32
  }
  func.func @transform_1(%arg0: i32, %arg1: i32) -> (i32, i32, i32, i32) {
    %c0_i32 = arith.constant 0 : i32
    %c0_i32_0 = arith.constant 0 : i32
    %c0_i32_1 = arith.constant 0 : i32
    %c0_i32_2 = arith.constant 0 : i32
    return %arg0, %c0_i32, %c0_i32_0, %c0_i32_1 : i32, i32, i32, i32
  }
  func.func @transform_2(%arg0: i32, %arg1: i32) -> (i32, i32, i32, i32) {
    %c0_i32 = arith.constant 0 : i32
    %c0_i32_0 = arith.constant 0 : i32
    %c0_i32_1 = arith.constant 0 : i32
    %c0_i32_2 = arith.constant 0 : i32
    return %arg0, %c0_i32, %c0_i32_0, %c0_i32_1 : i32, i32, i32, i32
  }
  func.func @transform_3(%arg0: i32, %arg1: i32) -> (i32, i32, i32, i32) {
    %c0_i32 = arith.constant 0 : i32
    %c0_i32_0 = arith.constant 0 : i32
    %c0_i32_1 = arith.constant 0 : i32
    %c0_i32_2 = arith.constant 0 : i32
    return %arg0, %c0_i32, %c0_i32_0, %c0_i32_1 : i32, i32, i32, i32
  }
  func.func @transform_4(%arg0: i32, %arg1: i32) -> (i32, i32, i32) {
    %c0_i32 = arith.constant 0 : i32
    %c0_i32_0 = arith.constant 0 : i32
    %c0_i32_1 = arith.constant 0 : i32
    return %c0_i32, %c0_i32_0, %arg1 : i32, i32, i32
  }
  func.func @transform_5(%arg0: i32, %arg1: i32) -> (i32, i32) {
    %c0_i32 = arith.constant 0 : i32
    %c0_i32_0 = arith.constant 0 : i32
    return %c0_i32, %arg1 : i32, i32
  }
  func.func @transform_6(%arg0: i32, %arg1: i32) -> (i32, i32, i32, i32) {
    %c0_i32 = arith.constant 0 : i32
    %c0_i32_0 = arith.constant 0 : i32
    %c0_i32_1 = arith.constant 0 : i32
    return %arg0, %c0_i32, %c0_i32_0, %arg1 : i32, i32, i32, i32
  }
}

</mosaic_0001>

<llo_original>
// kernel: downsample_forward.1
$region0: #{downsample_forward.1}
  #allocation0 [shape = 'u32[]', space=smem, size = 0x4, offset = 0x4, fixed_abs, tag = 'smem constant byte address 0x4 - core index']
  #allocation1 [shape = 'u32[144,128]{1,0:T(1,128)}', space=vmem, size = 0x12000, scoped, tag = 'internal scratch']
  %s0 = inlined_call_operand.vmem [shape: bf16[2,9,9,128], index: 0, kind: input, shape index: {}]
  %s1 = inlined_call_operand.vmem [shape: bf16[2,9,9,128], index: 1, kind: input, shape index: {}]
  %s2 = inlined_call_operand.vmem [shape: bf16[2,9,9,128], index: 2, kind: input, shape index: {}]
  %s3 = inlined_call_operand.vmem [shape: bf16[2,9,9,128], index: 3, kind: input, shape index: {}]
  %s4 = inlined_call_operand.vmem [shape: bf16[9,128,128], index: 4, kind: input, shape index: {}]
  %s5 = inlined_call_operand.vmem [shape: f32[1,128], index: 5, kind: input, shape index: {}]
  %s6 = inlined_call_operand.hbm [shape: f32[2,8,8,128], index: 6, kind: output, shape index: {}]
  %s7 = sld [smem:[#allocation0]]
  $region57: #{downsample_forward.1} parent=0
    _
  %s9 = ssub.s32 1, %s7
  %s10 = scalar_select 0, %s9, %s7
  $region1: #{downsample_forward.1} parent=0
    #allocation2 [shape = 'u8[65536]{0}', space=vmem, size = 0x10000, scoped, tag = 'output window, operand 0']
    #allocation3 [shape = 's32[2]{0}', space=sflag, size = 0x8, scoped, tag = 'scoped memory for downsample_forward.1']
    %11 = vsyncpa [#allocation3], 0
    %s12 = scalar_lea.sflag [#allocation3], 1
    %13 = vsyncpa %s12, 0
    loop: start=0, step=1, limit=4
    $region2: #{downsample_forward.1} parent=1 // loop_pre_header
      _
    $region3: #{downsample_forward.1} parent=1 // loop_header
      %s15 = sphi 0, %s19
      %p16 = scmp.ge.s32.totalorder %s15, 4
      %s22 = sphi 0, %s34
      %s23 = sphi 0, %s30
      %s24 = sphi 0, %s22
      %s25 = sphi 0, %s23
      %s26 = sphi 0, %s24
      %s27 = sphi 0, %s25
      %s37 = sphi 0, %s39
      %s40 = sphi 0, %s37
      %s41 = sphi 0, %s40
      %s57 = sphi 0, %s41
      %s63 = sphi 0, %s65
      %s66 = sphi 0, %s63
      %s67 = sphi 0, %s66
      %s83 = sphi 0, %s67
      %s89 = sphi 0, %s91
      %s92 = sphi 0, %s89
      %s93 = sphi 0, %s92
      %s109 = sphi 0, %s93
      %s115 = sphi 0, %s117
      %s118 = sphi 0, %s115
      %s119 = sphi 0, %s118
      %s135 = sphi 0, %s119
      %s141 = sphi 0, %s143
      %s144 = sphi 0, %s141
      %s145 = sphi 0, %s144
      %s161 = sphi 0, %s145
      %s167 = sphi 0, %s169
      %s170 = sphi 0, %s167
      %s171 = sphi 0, %s170
      %s187 = sphi 0, %s171
      %s195 = sphi 0, %s197
      %s198 = sphi 0, %s195
      %s199 = sphi 0, %s198
      %s215 = sphi 0, %s199
    $region4: #{downsample_forward.1} parent=1 // loop_header_branch
      %18 = sbr.rel (%p16) target = $region8
    $region5: #{downsample_forward.1} parent=1 // loop_body
      %s20 = ssub.s32 %s15, 1
      %s21 = ssub.s32 %s15, 2
      %s28 = sadd.s32 1, %s23
      %p29 = scmp.ge.s32.totalorder %s28, 1
      %s30 = scalar_select %p29, 0, %s28
      %s31 = sadd.s32 1, %s22
      %s32 = scalar_select %p29, %s31, %s22
      %p33 = scmp.ge.s32.totalorder %s32, 2
      %s34 = scalar_select %p33, 0, %s32
      %s35 = ssub.s32 %s22, %s34
      %p36 = scmp.eq.s32.totalorder %s35, 0
      %s38 = sadd.s32 %s37, 1
      %s39 = scalar_select %p36, %s37, %s38
      %p42 = pneg %p36
      %p43 = scmp.eq.s32.totalorder %s15, 1
      %p44 = por %p42, %p43
      %p45 = scmp.ne.s32.totalorder %s37, %s40
      %p46 = scmp.eq.s32.totalorder %s15, 0
      %p47 = por %p45, %p46
      %p48 = scmp.ne.s32.totalorder %s37, %s40
      %p49 = scmp.eq.s32.totalorder %s20, 1
      %p50 = por %p48, %p49
      %p51 = scmp.ne.s32.totalorder %s40, %s41
      %p52 = scmp.eq.s32.totalorder %s20, 0
      %p53 = por %p51, %p52
      %p54 = scmp.ne.s32.totalorder %s40, %s41
      %p55 = scmp.eq.s32.totalorder %s21, 1
      %p56 = por %p54, %p55
      %p58 = scmp.ne.s32.totalorder %s41, %s57
      %p59 = scmp.eq.s32.totalorder %s21, 0
      %p60 = por %p58, %p59
      %s61 = ssub.s32 %s22, %s34
      %p62 = scmp.eq.s32.totalorder %s61, 0
      %s64 = sadd.s32 %s63, 1
      %s65 = scalar_select %p62, %s63, %s64
      %p68 = pneg %p62
      %p69 = scmp.eq.s32.totalorder %s15, 1
      %p70 = por %p68, %p69
      %p71 = scmp.ne.s32.totalorder %s63, %s66
      %p72 = scmp.eq.s32.totalorder %s15, 0
      %p73 = por %p71, %p72
      %p74 = scmp.ne.s32.totalorder %s63, %s66
      %p75 = scmp.eq.s32.totalorder %s20, 1
      %p76 = por %p74, %p75
      %p77 = scmp.ne.s32.totalorder %s66, %s67
      %p78 = scmp.eq.s32.totalorder %s20, 0
      %p79 = por %p77, %p78
      %p80 = scmp.ne.s32.totalorder %s66, %s67
      %p81 = scmp.eq.s32.totalorder %s21, 1
      %p82 = por %p80, %p81
      %p84 = scmp.ne.s32.totalorder %s67, %s83
      %p85 = scmp.eq.s32.totalorder %s21, 0
      %p86 = por %p84, %p85
      %s87 = ssub.s32 %s22, %s34
      %p88 = scmp.eq.s32.totalorder %s87, 0
      %s90 = sadd.s32 %s89, 1
      %s91 = scalar_select %p88, %s89, %s90
      %p94 = pneg %p88
      %p95 = scmp.eq.s32.totalorder %s15, 1
      %p96 = por %p94, %p95
      %p97 = scmp.ne.s32.totalorder %s89, %s92
      %p98 = scmp.eq.s32.totalorder %s15, 0
      %p99 = por %p97, %p98
      %p100 = scmp.ne.s32.totalorder %s89, %s92
      %p101 = scmp.eq.s32.totalorder %s20, 1
      %p102 = por %p100, %p101
      %p103 = scmp.ne.s32.totalorder %s92, %s93
      %p104 = scmp.eq.s32.totalorder %s20, 0
      %p105 = por %p103, %p104
      %p106 = scmp.ne.s32.totalorder %s92, %s93
      %p107 = scmp.eq.s32.totalorder %s21, 1
      %p108 = por %p106, %p107
      %p110 = scmp.ne.s32.totalorder %s93, %s109
      %p111 = scmp.eq.s32.totalorder %s21, 0
      %p112 = por %p110, %p111
      %s113 = ssub.s32 %s22, %s34
      %p114 = scmp.eq.s32.totalorder %s113, 0
      %s116 = sadd.s32 %s115, 1
      %s117 = scalar_select %p114, %s115, %s116
      %p120 = pneg %p114
      %p121 = scmp.eq.s32.totalorder %s15, 1
      %p122 = por %p120, %p121
      %p123 = scmp.ne.s32.totalorder %s115, %s118
      %p124 = scmp.eq.s32.totalorder %s15, 0
      %p125 = por %p123, %p124
      %p126 = scmp.ne.s32.totalorder %s115, %s118
      %p127 = scmp.eq.s32.totalorder %s20, 1
      %p128 = por %p126, %p127
      %p129 = scmp.ne.s32.totalorder %s118, %s119
      %p130 = scmp.eq.s32.totalorder %s20, 0
      %p131 = por %p129, %p130
      %p132 = scmp.ne.s32.totalorder %s118, %s119
      %p133 = scmp.eq.s32.totalorder %s21, 1
      %p134 = por %p132, %p133
      %p136 = scmp.ne.s32.totalorder %s119, %s135
      %p137 = scmp.eq.s32.totalorder %s21, 0
      %p138 = por %p136, %p137
      %s139 = ssub.s32 %s23, %s30
      %p140 = scmp.eq.s32.totalorder %s139, 0
      %s142 = sadd.s32 %s141, 1
      %s143 = scalar_select %p140, %s141, %s142
      %p146 = pneg %p140
      %p147 = scmp.eq.s32.totalorder %s15, 1
      %p148 = por %p146, %p147
      %p149 = scmp.ne.s32.totalorder %s141, %s144
      %p150 = scmp.eq.s32.totalorder %s15, 0
      %p151 = por %p149, %p150
      %p152 = scmp.ne.s32.totalorder %s141, %s144
      %p153 = scmp.eq.s32.totalorder %s20, 1
      %p154 = por %p152, %p153
      %p155 = scmp.ne.s32.totalorder %s144, %s145
      %p156 = scmp.eq.s32.totalorder %s20, 0
      %p157 = por %p155, %p156
      %p158 = scmp.ne.s32.totalorder %s144, %s145
      %p159 = scmp.eq.s32.totalorder %s21, 1
      %p160 = por %p158, %p159
      %p162 = scmp.ne.s32.totalorder %s145, %s161
      %p163 = scmp.eq.s32.totalorder %s21, 0
      %p164 = por %p162, %p163
      %s165 = ssub.s32 %s23, %s30
      %p166 = scmp.eq.s32.totalorder %s165, 0
      %s168 = sadd.s32 %s167, 1
      %s169 = scalar_select %p166, %s167, %s168
      %p172 = pneg %p166
      %p173 = scmp.eq.s32.totalorder %s15, 1
      %p174 = por %p172, %p173
      %p175 = scmp.ne.s32.totalorder %s167, %s170
      %p176 = scmp.eq.s32.totalorder %s15, 0
      %p177 = por %p175, %p176
      %p178 = scmp.ne.s32.totalorder %s167, %s170
      %p179 = scmp.eq.s32.totalorder %s20, 1
      %p180 = por %p178, %p179
      %p181 = scmp.ne.s32.totalorder %s170, %s171
      %p182 = scmp.eq.s32.totalorder %s20, 0
      %p183 = por %p181, %p182
      %p184 = scmp.ne.s32.totalorder %s170, %s171
      %p185 = scmp.eq.s32.totalorder %s21, 1
      %p186 = por %p184, %p185
      %p188 = scmp.ne.s32.totalorder %s171, %s187
      %p189 = scmp.eq.s32.totalorder %s21, 0
      %p190 = por %p188, %p189
      %s191 = ssub.s32 %s22, %s34
      %s192 = ssub.s32 %s23, %s30
      %s193 = sor.u32 %s191, %s192
      %p194 = scmp.eq.s32.totalorder %s193, 0
      %s196 = sadd.s32 %s195, 1
      %s197 = scalar_select %p194, %s195, %s196
      %p200 = pneg %p194
      %p201 = scmp.eq.s32.totalorder %s15, 1
      %p202 = por %p200, %p201
      %p203 = scmp.ne.s32.totalorder %s195, %s198
      %p204 = scmp.eq.s32.totalorder %s15, 0
      %p205 = por %p203, %p204
      %p206 = scmp.ne.s32.totalorder %s195, %s198
      %p207 = scmp.eq.s32.totalorder %s20, 1
      %p208 = por %p206, %p207
      %p209 = scmp.ne.s32.totalorder %s198, %s199
      %p210 = scmp.eq.s32.totalorder %s20, 0
      %p211 = por %p209, %p210
      %p212 = scmp.ne.s32.totalorder %s198, %s199
      %p213 = scmp.eq.s32.totalorder %s21, 1
      %p214 = por %p212, %p213
      %p216 = scmp.ne.s32.totalorder %s199, %s215
      %p217 = scmp.eq.s32.totalorder %s21, 0
      %p218 = por %p216, %p217
      %p219 = scmp.le.s32.totalorder 1, %s15
      %p220 = scmp.lt.s32.totalorder %s15, 3
      %p221 = pnand %p219, %p220
      %p222 = pneg %p221
      // Predicated region
      $region9: #{downsample_forward.1} parent=5 // pred_check
        _
      $region10: #{downsample_forward.1} parent=5 // pred_check_branch
        %224 = sbr.rel (%p221) target = $region12
      $region11: #{downsample_forward.1} parent=5 // pred_region
        %s225 = ssub.s32 %s15, 1
        // Predicated region
        $region13: #{downsample_forward.1} parent=11 // pred_check
          %p226 = pneg %p157
        $region14: #{downsample_forward.1} parent=11 // pred_check_branch
          %228 = sbr.rel (%p226) target = $region16
        $region15: #{downsample_forward.1} parent=11 // pred_region
          %p229 = scmp.lt.s32.totalorder %s25, 0
          %s230 = scalar_select %p229, %s25, 0
          %s231 = smul.addr %s230, 4
          %s232 = scalar_lea.vmem %s4, %s231
        $region16: #{downsample_forward.1} parent=11 // pred_fallthru
          _
        // Predicated region
        $region17: #{downsample_forward.1} parent=11 // pred_check
          %p233 = pneg %p183
        $region18: #{downsample_forward.1} parent=11 // pred_check_branch
          %235 = sbr.rel (%p233) target = $region20
        $region19: #{downsample_forward.1} parent=11 // pred_region
          %p236 = scmp.lt.s32.totalorder %s25, 0
          %s237 = scalar_select %p236, %s25, 0
          %s238 = scalar_lea.vmem %s5, %s237
        $region20: #{downsample_forward.1} parent=11 // pred_fallthru
          _
      $region12: #{downsample_forward.1} parent=5 // pred_fallthru
        _
      %p239 = scmp.lt.s32.totalorder %s15, 2
      // Predicated region
      $region21: #{downsample_forward.1} parent=5 // pred_check
        %p240 = pneg %p239
      $region22: #{downsample_forward.1} parent=5 // pred_check_branch
        %242 = sbr.rel (%p240) target = $region24
      $region23: #{downsample_forward.1} parent=5 // pred_region
        // Predicated region
        $region25: #{downsample_forward.1} parent=23 // pred_check
          %p243 = pneg %p47
        $region26: #{downsample_forward.1} parent=23 // pred_check_branch
          %245 = sbr.rel (%p243) target = $region28
        $region27: #{downsample_forward.1} parent=23 // pred_region
          %p246 = scmp.lt.s32.totalorder %s22, 1
          %s247 = scalar_select %p246, %s22, 1
          %s248 = smul.addr %s247, 18
          %s249 = smul.addr %s248, 4
          %s250 = scalar_lea.vmem %s0, %s249
        $region28: #{downsample_forward.1} parent=23 // pred_fallthru
          _
        // Predicated region
        $region29: #{downsample_forward.1} parent=23 // pred_check
          %p251 = pneg %p73
        $region30: #{downsample_forward.1} parent=23 // pred_check_branch
          %253 = sbr.rel (%p251) target = $region32
        $region31: #{downsample_forward.1} parent=23 // pred_region
          %p254 = scmp.lt.s32.totalorder %s22, 1
          %s255 = scalar_select %p254, %s22, 1
          %s256 = smul.addr %s255, 18
          %s257 = smul.addr %s256, 4
          %s258 = scalar_lea.vmem %s1, %s257
        $region32: #{downsample_forward.1} parent=23 // pred_fallthru
          _
        // Predicated region
        $region33: #{downsample_forward.1} parent=23 // pred_check
          %p259 = pneg %p99
        $region34: #{downsample_forward.1} parent=23 // pred_check_branch
          %261 = sbr.rel (%p259) target = $region36
        $region35: #{downsample_forward.1} parent=23 // pred_region
          %p262 = scmp.lt.s32.totalorder %s22, 1
          %s263 = scalar_select %p262, %s22, 1
          %s264 = smul.addr %s263, 18
          %s265 = smul.addr %s264, 4
          %s266 = scalar_lea.vmem %s2, %s265
        $region36: #{downsample_forward.1} parent=23 // pred_fallthru
          _
        // Predicated region
        $region37: #{downsample_forward.1} parent=23 // pred_check
          %p267 = pneg %p125
        $region38: #{downsample_forward.1} parent=23 // pred_check_branch
          %269 = sbr.rel (%p267) target = $region40
        $region39: #{downsample_forward.1} parent=23 // pred_region
          %p270 = scmp.lt.s32.totalorder %s22, 1
          %s271 = scalar_select %p270, %s22, 1
          %s272 = smul.addr %s271, 18
          %s273 = smul.addr %s272, 4
          %s274 = scalar_lea.vmem %s3, %s273
        $region40: #{downsample_forward.1} parent=23 // pred_fallthru
          _
      $region24: #{downsample_forward.1} parent=5 // pred_fallthru
        _
      %p275 = scmp.le.s32.totalorder 1, %s15
      %p276 = scmp.lt.s32.totalorder %s15, 3
      %p277 = pnand %p275, %p276
      %p278 = pneg %p277
      // Predicated region
      $region41: #{downsample_forward.1} parent=5 // pred_check
        _
      $region42: #{downsample_forward.1} parent=5 // pred_check_branch
        %280 = sbr.rel (%p277) target = $region44
      $region43: #{downsample_forward.1} parent=5 // pred_region
        %s281 = ssub.s32 %s15, 1
        %p282 = scmp.lt.s32.totalorder %s24, 1
        %s283 = scalar_select %p282, %s24, 1
        %s284 = smul.addr %s283, 18
        %s285 = smul.addr %s284, 4
        %s286 = scalar_lea.vmem %s0, %s285
        %p287 = pneg %p53
        %p288 = pneg %p50
        %p289 = scmp.lt.s32.totalorder %s24, 1
        %s290 = scalar_select %p289, %s24, 1
        %s291 = smul.addr %s290, 18
        %s292 = smul.addr %s291, 4
        %s293 = scalar_lea.vmem %s1, %s292
        %p294 = pneg %p79
        %p295 = pneg %p76
        %p296 = scmp.lt.s32.totalorder %s24, 1
        %s297 = scalar_select %p296, %s24, 1
        %s298 = smul.addr %s297, 18
        %s299 = smul.addr %s298, 4
        %s300 = scalar_lea.vmem %s2, %s299
        %p301 = pneg %p105
        %p302 = pneg %p102
        %p303 = scmp.lt.s32.totalorder %s24, 1
        %s304 = scalar_select %p303, %s24, 1
        %s305 = smul.addr %s304, 18
        %s306 = smul.addr %s305, 4
        %s307 = scalar_lea.vmem %s3, %s306
        %p308 = pneg %p131
        %p309 = pneg %p128
        %p310 = scmp.lt.s32.totalorder %s25, 0
        %s311 = scalar_select %p310, %s25, 0
        %s312 = smul.addr %s311, 4
        %s313 = scalar_lea.vmem %s4, %s312
        %p314 = pneg %p157
        %p315 = pneg %p154
        %p316 = scmp.lt.s32.totalorder %s25, 0
        %s317 = scalar_select %p316, %s25, 0
        %s318 = scalar_lea.vmem %s5, %s317
        %p319 = pneg %p183
        %p320 = pneg %p180
        %p321 = pneg %p211
        %p322 = pneg %p208
        %s323 = sand.u32 %s198, 1
        %s324 = scalar_lea.sflag [#allocation3], %s323
        %s325 = sand.u32 %s198, 1
        %s326 = smul.addr %s325, 64
        %s327 = scalar_lea.vmem [#allocation2], %s326
        %p328 = scmp.lt.s32.totalorder %s24, 1
        %s329 = scalar_select %p328, %s24, 1
        %s330 = smul.addr %s329, 18
        %s331 = smul.addr %s330, 4
        %s332 = scalar_lea.vmem %s0, %s331
        %p333 = scmp.lt.s32.totalorder %s24, 1
        %s334 = scalar_select %p333, %s24, 1
        %s335 = smul.addr %s334, 18
        %s336 = smul.addr %s335, 4
        %s337 = scalar_lea.vmem %s1, %s336
        %p338 = scmp.lt.s32.totalorder %s24, 1
        %s339 = scalar_select %p338, %s24, 1
        %s340 = smul.addr %s339, 18
        %s341 = smul.addr %s340, 4
        %s342 = scalar_lea.vmem %s2, %s341
        %p343 = scmp.lt.s32.totalorder %s24, 1
        %s344 = scalar_select %p343, %s24, 1
        %s345 = smul.addr %s344, 18
        %s346 = smul.addr %s345, 4
        %s347 = scalar_lea.vmem %s3, %s346
        %p348 = scmp.lt.s32.totalorder %s25, 0
        %s349 = scalar_select %p348, %s25, 0
        %s350 = smul.addr %s349, 4
        %s351 = scalar_lea.vmem %s4, %s350
        %p352 = scmp.lt.s32.totalorder %s25, 0
        %s353 = scalar_select %p352, %s25, 0
        %s354 = scalar_lea.vmem %s5, %s353
        %v356 = vld [vmem:[%s332] sm:$0xf]
        %v357 = vld [vmem:[%s332 + $0x8] sm:$0xf]
        %v358 = vld [vmem:[%s332 + $0x10] sm:$0xf]
        %v359 = vld [vmem:[%s332 + $0x18] sm:$0xf]
        %v360 = vld [vmem:[%s332 + $0x20] sm:$0xf]
        %v361 = vld [vmem:[%s332 + $0x28] sm:$0xf]
        %v362 = vld [vmem:[%s332 + $0x30] sm:$0xf]
        %v363 = vld [vmem:[%s332 + $0x38] sm:$0xf]
        %v364 = vld [vmem:[%s351] sm:$0xf]
        %v365 = vld [vmem:[%s351 + $0x4] sm:$0xf]
        %v366 = vld [vmem:[%s351 + $0x8] sm:$0xf]
        %v367 = vld [vmem:[%s351 + $0xc] sm:$0xf]
        %v368 = vld [vmem:[%s351 + $0x10] sm:$0xf]
        %v369 = vld [vmem:[%s351 + $0x14] sm:$0xf]
        %v370 = vld [vmem:[%s351 + $0x18] sm:$0xf]
        %v371 = vld [vmem:[%s351 + $0x1c] sm:$0xf]
        %v372 = vld [vmem:[%s351 + $0x20] sm:$0xf]
        %v373 = vld [vmem:[%s351 + $0x24] sm:$0xf]
        %v374 = vld [vmem:[%s351 + $0x28] sm:$0xf]
        %v375 = vld [vmem:[%s351 + $0x2c] sm:$0xf]
        %v376 = vld [vmem:[%s351 + $0x30] sm:$0xf]
        %v377 = vld [vmem:[%s351 + $0x34] sm:$0xf]
        %v378 = vld [vmem:[%s351 + $0x38] sm:$0xf]
        %v379 = vld [vmem:[%s351 + $0x3c] sm:$0xf]
        %v380 = vld [vmem:[%s337] sm:$0xf]
        %v381 = vld [vmem:[%s337 + $0x8] sm:$0xf]
        %v382 = vld [vmem:[%s337 + $0x10] sm:$0xf]
        %v383 = vld [vmem:[%s337 + $0x18] sm:$0xf]
        %v384 = vld [vmem:[%s337 + $0x20] sm:$0xf]
        %v385 = vld [vmem:[%s337 + $0x28] sm:$0xf]
        %v386 = vld [vmem:[%s337 + $0x30] sm:$0xf]
        %v387 = vld [vmem:[%s337 + $0x38] sm:$0xf]
        %s388 = scalar_lea.vmem %s351, 64
        %v389 = vld [vmem:[%s388] sm:$0xf]
        %v390 = vld [vmem:[%s388 + $0x4] sm:$0xf]
        %v391 = vld [vmem:[%s388 + $0x8] sm:$0xf]
        %v392 = vld [vmem:[%s388 + $0xc] sm:$0xf]
        %v393 = vld [vmem:[%s388 + $0x10] sm:$0xf]
        %v394 = vld [vmem:[%s388 + $0x14] sm:$0xf]
        %v395 = vld [vmem:[%s388 + $0x18] sm:$0xf]
        %v396 = vld [vmem:[%s388 + $0x1c] sm:$0xf]
        %v397 = vld [vmem:[%s388 + $0x20] sm:$0xf]
        %v398 = vld [vmem:[%s388 + $0x24] sm:$0xf]
        %v399 = vld [vmem:[%s388 + $0x28] sm:$0xf]
        %v400 = vld [vmem:[%s388 + $0x2c] sm:$0xf]
        %v401 = vld [vmem:[%s388 + $0x30] sm:$0xf]
        %v402 = vld [vmem:[%s388 + $0x34] sm:$0xf]
        %v403 = vld [vmem:[%s388 + $0x38] sm:$0xf]
        %v404 = vld [vmem:[%s388 + $0x3c] sm:$0xf]
        %v413 = vunpack.c.l.b16 %v380
        %v414 = vunpack.c.l.b16 %v381
        %v415 = vunpack.c.l.b16 %v382
        %v416 = vunpack.c.l.b16 %v383
        %v417 = vunpack.c.l.b16 %v384
        %v418 = vunpack.c.l.b16 %v385
        %v419 = vunpack.c.l.b16 %v386
        %v420 = vunpack.c.l.b16 %v387
        %v421 = vpack.c.b16 %v414, %v413
        %v422 = vpack.c.b16 %v416, %v415
        %v423 = vpack.c.b16 %v418, %v417
        %v424 = vpack.c.b16 %v420, %v419
        %v445 = vunpack.c.l.b16 %v389
        %v446 = vunpack.c.l.b16 %v390
        %v447 = vunpack.c.l.b16 %v391
        %v448 = vunpack.c.l.b16 %v392
        %v449 = vunpack.c.l.b16 %v393
        %v450 = vunpack.c.l.b16 %v394
        %v451 = vunpack.c.l.b16 %v395
        %v452 = vunpack.c.l.b16 %v396
        %v453 = vunpack.c.l.b16 %v397
        %v454 = vunpack.c.l.b16 %v398
        %v455 = vunpack.c.l.b16 %v399
        %v456 = vunpack.c.l.b16 %v400
        %v457 = vunpack.c.l.b16 %v401
        %v458 = vunpack.c.l.b16 %v402
        %v459 = vunpack.c.l.b16 %v403
        %v460 = vunpack.c.l.b16 %v404
        %v461 = vpack.c.b16 %v446, %v445
        %v462 = vpack.c.b16 %v448, %v447
        %v463 = vpack.c.b16 %v450, %v449
        %v464 = vpack.c.b16 %v452, %v451
        %v465 = vpack.c.b16 %v454, %v453
        %v466 = vpack.c.b16 %v456, %v455
        %v467 = vpack.c.b16 %v458, %v457
        %v468 = vpack.c.b16 %v460, %v459
        %477 = vmatprep.subr.bf16.mxu0 0
        %478 = vmatpush1.bf16.msra.mxu0 %v468
        %479 = vmatprep.subr.bf16.mxu0 0
        %480 = vmatpush1.bf16.msra.mxu0 %v467
        %481 = vmatprep.subr.bf16.mxu0 0
        %482 = vmatpush1.bf16.msra.mxu0 %v466
        %483 = vmatprep.subr.bf16.mxu0 0
        %484 = vmatpush1.bf16.msra.mxu0 %v465
        %485 = vmatprep.subr.bf16.mxu0 0
        %486 = vmatpush1.bf16.msra.mxu0 %v464
        %487 = vmatprep.subr.bf16.mxu0 0
        %488 = vmatpush1.bf16.msra.mxu0 %v463
        %489 = vmatprep.subr.bf16.mxu0 0
        %490 = vmatpush1.bf16.msra.mxu0 %v462
        %491 = vmatprep.subr.bf16.mxu0 0
        %492 = vmatpush1.bf16.msra.mxu0 %v461
        %493 = vmatprep.subr.bf16.mxu0 0
        %494 = vmatpush2.bf16.msra.mxu0 0
        %495 = vmatprep.subr.bf16.mxu0 0
        %496 = vmatpush2.bf16.msra.mxu0 0
        %497 = vmatprep.subr.bf16.mxu0 0
        %498 = vmatpush2.bf16.msra.mxu0 0
        %499 = vmatprep.subr.bf16.mxu0 0
        %500 = vmatpush2.bf16.msra.mxu0 0
        %501 = vmatprep.subr.bf16.mxu0 0
        %502 = vmatpush2.bf16.msra.mxu0 0
        %503 = vmatprep.subr.bf16.mxu0 0
        %504 = vmatpush2.bf16.msra.mxu0 0
        %505 = vmatprep.subr.bf16.mxu0 0
        %506 = vmatpush2.bf16.msra.mxu0 0
        %507 = vmatprep.subr.bf16.mxu0 0
        %508 = vmatpush2.bf16.msra.mxu0 0
        %509 = vmatprep.mubr.bf16.mxu0 0
        %510 = vmatmul.mubr.bf16.gmra.mxu0 %v421
        %v511 = vpop.f32.mrf.mxu0
        %v512 = vadd.f32 0.0, %v511
        %v513 = vpop.f32.mrf.mxu0
        %v514 = vpop.f32.mrf.mxu0
        %v515 = vadd.f32 0.0, %v514
        %v516 = vpop.f32.mrf.mxu0
        %517 = vmatprep.mubr.bf16.mxu0 0
        %518 = vmatmul.mubr.bf16.gmra.mxu0 %v422
        %v519 = vpop.f32.mrf.mxu0
        %v520 = vadd.f32 0.0, %v519
        %v521 = vpop.f32.mrf.mxu0
        %v522 = vpop.f32.mrf.mxu0
        %v523 = vadd.f32 0.0, %v522
        %v524 = vpop.f32.mrf.mxu0
        %525 = vmatprep.mubr.bf16.mxu0 0
        %526 = vmatmul.mubr.bf16.gmra.mxu0 %v423
        %v527 = vpop.f32.mrf.mxu0
        %v528 = vadd.f32 0.0, %v527
        %v529 = vpop.f32.mrf.mxu0
        %v530 = vpop.f32.mrf.mxu0
        %v531 = vadd.f32 0.0, %v530
        %v532 = vpop.f32.mrf.mxu0
        %533 = vmatprep.mubr.bf16.mxu0 0
        %534 = vmatmul.mubr.bf16.gmra.mxu0 %v424
        %v535 = vpop.f32.mrf.mxu0
        %v536 = vadd.f32 0.0, %v535
        %v537 = vpop.f32.mrf.mxu0
        %v538 = vpop.f32.mrf.mxu0
        %v539 = vadd.f32 0.0, %v538
        %v540 = vpop.f32.mrf.mxu0
        %541 = vdwg.mxu0
        %v550 = vunpack.c.l.b16 %v356
        %v551 = vunpack.c.l.b16 %v357
        %v552 = vunpack.c.l.b16 %v358
        %v553 = vunpack.c.l.b16 %v359
        %v554 = vunpack.c.l.b16 %v360
        %v555 = vunpack.c.l.b16 %v361
        %v556 = vunpack.c.l.b16 %v362
        %v557 = vunpack.c.l.b16 %v363
        %v558 = vpack.c.b16 %v551, %v550
        %v559 = vpack.c.b16 %v553, %v552
        %v560 = vpack.c.b16 %v555, %v554
        %v561 = vpack.c.b16 %v557, %v556
        %v582 = vunpack.c.l.b16 %v364
        %v583 = vunpack.c.l.b16 %v365
        %v584 = vunpack.c.l.b16 %v366
        %v585 = vunpack.c.l.b16 %v367
        %v586 = vunpack.c.l.b16 %v368
        %v587 = vunpack.c.l.b16 %v369
        %v588 = vunpack.c.l.b16 %v370
        %v589 = vunpack.c.l.b16 %v371
        %v590 = vunpack.c.l.b16 %v372
        %v591 = vunpack.c.l.b16 %v373
        %v592 = vunpack.c.l.b16 %v374
        %v593 = vunpack.c.l.b16 %v375
        %v594 = vunpack.c.l.b16 %v376
        %v595 = vunpack.c.l.b16 %v377
        %v596 = vunpack.c.l.b16 %v378
        %v597 = vunpack.c.l.b16 %v379
        %v598 = vpack.c.b16 %v583, %v582
        %v599 = vpack.c.b16 %v585, %v584
        %v600 = vpack.c.b16 %v587, %v586
        %v601 = vpack.c.b16 %v589, %v588
        %v602 = vpack.c.b16 %v591, %v590
        %v603 = vpack.c.b16 %v593, %v592
        %v604 = vpack.c.b16 %v595, %v594
        %v605 = vpack.c.b16 %v597, %v596
        %614 = vmatprep.subr.bf16.mxu0 0
        %615 = vmatpush1.bf16.msra.mxu0 %v605
        %616 = vmatprep.subr.bf16.mxu0 0
        %617 = vmatpush1.bf16.msra.mxu0 %v604
        %618 = vmatprep.subr.bf16.mxu0 0
        %619 = vmatpush1.bf16.msra.mxu0 %v603
        %620 = vmatprep.subr.bf16.mxu0 0
        %621 = vmatpush1.bf16.msra.mxu0 %v602
        %622 = vmatprep.subr.bf16.mxu0 0
        %623 = vmatpush1.bf16.msra.mxu0 %v601
        %624 = vmatprep.subr.bf16.mxu0 0
        %625 = vmatpush1.bf16.msra.mxu0 %v600
        %626 = vmatprep.subr.bf16.mxu0 0
        %627 = vmatpush1.bf16.msra.mxu0 %v599
        %628 = vmatprep.subr.bf16.mxu0 0
        %629 = vmatpush1.bf16.msra.mxu0 %v598
        %630 = vmatprep.subr.bf16.mxu0 0
        %631 = vmatpush2.bf16.msra.mxu0 0
        %632 = vmatprep.subr.bf16.mxu0 0
        %633 = vmatpush2.bf16.msra.mxu0 0
        %634 = vmatprep.subr.bf16.mxu0 0
        %635 = vmatpush2.bf16.msra.mxu0 0
        %636 = vmatprep.subr.bf16.mxu0 0
        %637 = vmatpush2.bf16.msra.mxu0 0
        %638 = vmatprep.subr.bf16.mxu0 0
        %639 = vmatpush2.bf16.msra.mxu0 0
        %640 = vmatprep.subr.bf16.mxu0 0
        %641 = vmatpush2.bf16.msra.mxu0 0
        %642 = vmatprep.subr.bf16.mxu0 0
        %643 = vmatpush2.bf16.msra.mxu0 0
        %644 = vmatprep.subr.bf16.mxu0 0
        %645 = vmatpush2.bf16.msra.mxu0 0
        %646 = vmatprep.mubr.bf16.mxu0 0
        %647 = vmatmul.mubr.bf16.gmra.mxu0 %v558
        %v648 = vpop.f32.mrf.mxu0
        %v649 = vadd.f32 %v512, %v648
        %v650 = vpop.f32.mrf.mxu0
        %v651 = vpop.f32.mrf.mxu0
        %v652 = vadd.f32 %v515, %v651
        %v653 = vpop.f32.mrf.mxu0
        %654 = vmatprep.mubr.bf16.mxu0 0
        %655 = vmatmul.mubr.bf16.gmra.mxu0 %v559
        %v656 = vpop.f32.mrf.mxu0
        %v657 = vadd.f32 %v520, %v656
        %v658 = vpop.f32.mrf.mxu0
        %v659 = vpop.f32.mrf.mxu0
        %v660 = vadd.f32 %v523, %v659
        %v661 = vpop.f32.mrf.mxu0
        %662 = vmatprep.mubr.bf16.mxu0 0
        %663 = vmatmul.mubr.bf16.gmra.mxu0 %v560
        %v664 = vpop.f32.mrf.mxu0
        %v665 = vadd.f32 %v528, %v664
        %v666 = vpop.f32.mrf.mxu0
        %v667 = vpop.f32.mrf.mxu0
        %v668 = vadd.f32 %v531, %v667
        %v669 = vpop.f32.mrf.mxu0
        %670 = vmatprep.mubr.bf16.mxu0 0
        %671 = vmatmul.mubr.bf16.gmra.mxu0 %v561
        %v672 = vpop.f32.mrf.mxu0
        %v673 = vadd.f32 %v536, %v672
        %v674 = vpop.f32.mrf.mxu0
        %v675 = vpop.f32.mrf.mxu0
        %v676 = vadd.f32 %v539, %v675
        %v677 = vpop.f32.mrf.mxu0
        %678 = vdwg.mxu0
        %v679 = vld [vmem:[%s332] sm:$0xf]
        %v680 = vld [vmem:[%s332 + $0x4] sm:$0x1]
        %v681 = vld [vmem:[%s332 + $0x8] sm:$0xf]
        %v682 = vld [vmem:[%s332 + $0xc] sm:$0x1]
        %v683 = vld [vmem:[%s332 + $0x10] sm:$0xf]
        %v684 = vld [vmem:[%s332 + $0x14] sm:$0x1]
        %v685 = vld [vmem:[%s332 + $0x18] sm:$0xf]
        %v686 = vld [vmem:[%s332 + $0x1c] sm:$0x1]
        %v687 = vld [vmem:[%s332 + $0x20] sm:$0xf]
        %v688 = vld [vmem:[%s332 + $0x24] sm:$0x1]
        %v689 = vld [vmem:[%s332 + $0x28] sm:$0xf]
        %v690 = vld [vmem:[%s332 + $0x2c] sm:$0x1]
        %v691 = vld [vmem:[%s332 + $0x30] sm:$0xf]
        %v692 = vld [vmem:[%s332 + $0x34] sm:$0x1]
        %v693 = vld [vmem:[%s332 + $0x38] sm:$0xf]
        %v694 = vld [vmem:[%s332 + $0x3c] sm:$0x1]
        %vm695 = vsmask.f32 3328
        %vm696 = vsmask.f32 7440
        %vm697 = vmor %vm695, %vm696
        %v699 = vshrl.u32 %v679, 16
        %v701 = vrot.slane %v699, 4
        %v702 = vshll.u32 %v679, 16
        %v704 = vrot.slane %v702, 5
        %v705 = vor.u32 %v701, %v704
        %v706 = vrot.slane %v705, 4
        %v708 = vshll.u32 %v680, 16
        %v710 = vrot.slane %v708, 5
        %v711 = vsel %vm697, %v706, %v710
        %v713 = vshrl.u32 %v681, 16
        %v715 = vrot.slane %v713, 4
        %v716 = vshll.u32 %v681, 16
        %v718 = vrot.slane %v716, 5
        %v719 = vor.u32 %v715, %v718
        %v720 = vrot.slane %v719, 4
        %v722 = vshll.u32 %v682, 16
        %v724 = vrot.slane %v722, 5
        %v725 = vsel %vm697, %v720, %v724
        %v727 = vshrl.u32 %v683, 16
        %v729 = vrot.slane %v727, 4
        %v730 = vshll.u32 %v683, 16
        %v732 = vrot.slane %v730, 5
        %v733 = vor.u32 %v729, %v732
        %v734 = vrot.slane %v733, 4
        %v736 = vshll.u32 %v684, 16
        %v738 = vrot.slane %v736, 5
        %v739 = vsel %vm697, %v734, %v738
        %v741 = vshrl.u32 %v685, 16
        %v743 = vrot.slane %v741, 4
        %v744 = vshll.u32 %v685, 16
        %v746 = vrot.slane %v744, 5
        %v747 = vor.u32 %v743, %v746
        %v748 = vrot.slane %v747, 4
        %v750 = vshll.u32 %v686, 16
        %v752 = vrot.slane %v750, 5
        %v753 = vsel %vm697, %v748, %v752
        %v755 = vshrl.u32 %v687, 16
        %v757 = vrot.slane %v755, 4
        %v758 = vshll.u32 %v687, 16
        %v760 = vrot.slane %v758, 5
        %v761 = vor.u32 %v757, %v760
        %v762 = vrot.slane %v761, 4
        %v764 = vshll.u32 %v688, 16
        %v766 = vrot.slane %v764, 5
        %v767 = vsel %vm697, %v762, %v766
        %v769 = vshrl.u32 %v689, 16
        %v771 = vrot.slane %v769, 4
        %v772 = vshll.u32 %v689, 16
        %v774 = vrot.slane %v772, 5
        %v775 = vor.u32 %v771, %v774
        %v776 = vrot.slane %v775, 4
        %v778 = vshll.u32 %v690, 16
        %v780 = vrot.slane %v778, 5
        %v781 = vsel %vm697, %v776, %v780
        %v783 = vshrl.u32 %v691, 16
        %v785 = vrot.slane %v783, 4
        %v786 = vshll.u32 %v691, 16
        %v788 = vrot.slane %v786, 5
        %v789 = vor.u32 %v785, %v788
        %v790 = vrot.slane %v789, 4
        %v792 = vshll.u32 %v692, 16
        %v794 = vrot.slane %v792, 5
        %v795 = vsel %vm697, %v790, %v794
        %v797 = vshrl.u32 %v693, 16
        %v799 = vrot.slane %v797, 4
        %v800 = vshll.u32 %v693, 16
        %v802 = vrot.slane %v800, 5
        %v803 = vor.u32 %v799, %v802
        %v804 = vrot.slane %v803, 4
        %v806 = vshll.u32 %v694, 16
        %v808 = vrot.slane %v806, 5
        %v809 = vsel %vm697, %v804, %v808
        %s810 = scalar_lea.vmem %s351, 128
        %v811 = vld [vmem:[%s810] sm:$0xf]
        %v812 = vld [vmem:[%s810 + $0x4] sm:$0xf]
        %v813 = vld [vmem:[%s810 + $0x8] sm:$0xf]
        %v814 = vld [vmem:[%s810 + $0xc] sm:$0xf]
        %v815 = vld [vmem:[%s810 + $0x10] sm:$0xf]
        %v816 = vld [vmem:[%s810 + $0x14] sm:$0xf]
        %v817 = vld [vmem:[%s810 + $0x18] sm:$0xf]
        %v818 = vld [vmem:[%s810 + $0x1c] sm:$0xf]
        %v819 = vld [vmem:[%s810 + $0x20] sm:$0xf]
        %v820 = vld [vmem:[%s810 + $0x24] sm:$0xf]
        %v821 = vld [vmem:[%s810 + $0x28] sm:$0xf]
        %v822 = vld [vmem:[%s810 + $0x2c] sm:$0xf]
        %v823 = vld [vmem:[%s810 + $0x30] sm:$0xf]
        %v824 = vld [vmem:[%s810 + $0x34] sm:$0xf]
        %v825 = vld [vmem:[%s810 + $0x38] sm:$0xf]
        %v826 = vld [vmem:[%s810 + $0x3c] sm:$0xf]
        %v827 = vunpack.c.l.b16 %v711
        %v828 = vunpack.c.l.b16 %v725
        %v829 = vunpack.c.l.b16 %v739
        %v830 = vunpack.c.l.b16 %v753
        %v831 = vunpack.c.l.b16 %v767
        %v832 = vunpack.c.l.b16 %v781
        %v833 = vunpack.c.l.b16 %v795
        %v834 = vunpack.c.l.b16 %v809
        %v835 = vpack.c.b16 %v828, %v827
        %v836 = vpack.c.b16 %v830, %v829
        %v837 = vpack.c.b16 %v832, %v831
        %v838 = vpack.c.b16 %v834, %v833
        %v859 = vunpack.c.l.b16 %v811
        %v860 = vunpack.c.l.b16 %v812
        %v861 = vunpack.c.l.b16 %v813
        %v862 = vunpack.c.l.b16 %v814
        %v863 = vunpack.c.l.b16 %v815
        %v864 = vunpack.c.l.b16 %v816
        %v865 = vunpack.c.l.b16 %v817
        %v866 = vunpack.c.l.b16 %v818
        %v867 = vunpack.c.l.b16 %v819
        %v868 = vunpack.c.l.b16 %v820
        %v869 = vunpack.c.l.b16 %v821
        %v870 = vunpack.c.l.b16 %v822
        %v871 = vunpack.c.l.b16 %v823
        %v872 = vunpack.c.l.b16 %v824
        %v873 = vunpack.c.l.b16 %v825
        %v874 = vunpack.c.l.b16 %v826
        %v875 = vpack.c.b16 %v860, %v859
        %v876 = vpack.c.b16 %v862, %v861
        %v877 = vpack.c.b16 %v864, %v863
        %v878 = vpack.c.b16 %v866, %v865
        %v879 = vpack.c.b16 %v868, %v867
        %v880 = vpack.c.b16 %v870, %v869
        %v881 = vpack.c.b16 %v872, %v871
        %v882 = vpack.c.b16 %v874, %v873
        %891 = vmatprep.subr.bf16.mxu0 0
        %892 = vmatpush1.bf16.msra.mxu0 %v882
        %893 = vmatprep.subr.bf16.mxu0 0
        %894 = vmatpush1.bf16.msra.mxu0 %v881
        %895 = vmatprep.subr.bf16.mxu0 0
        %896 = vmatpush1.bf16.msra.mxu0 %v880
        %897 = vmatprep.subr.bf16.mxu0 0
        %898 = vmatpush1.bf16.msra.mxu0 %v879
        %899 = vmatprep.subr.bf16.mxu0 0
        %900 = vmatpush1.bf16.msra.mxu0 %v878
        %901 = vmatprep.subr.bf16.mxu0 0
        %902 = vmatpush1.bf16.msra.mxu0 %v877
        %903 = vmatprep.subr.bf16.mxu0 0
        %904 = vmatpush1.bf16.msra.mxu0 %v876
        %905 = vmatprep.subr.bf16.mxu0 0
        %906 = vmatpush1.bf16.msra.mxu0 %v875
        %907 = vmatprep.subr.bf16.mxu0 0
        %908 = vmatpush2.bf16.msra.mxu0 0
        %909 = vmatprep.subr.bf16.mxu0 0
        %910 = vmatpush2.bf16.msra.mxu0 0
        %911 = vmatprep.subr.bf16.mxu0 0
        %912 = vmatpush2.bf16.msra.mxu0 0
        %913 = vmatprep.subr.bf16.mxu0 0
        %914 = vmatpush2.bf16.msra.mxu0 0
        %915 = vmatprep.subr.bf16.mxu0 0
        %916 = vmatpush2.bf16.msra.mxu0 0
        %917 = vmatprep.subr.bf16.mxu0 0
        %918 = vmatpush2.bf16.msra.mxu0 0
        %919 = vmatprep.subr.bf16.mxu0 0
        %920 = vmatpush2.bf16.msra.mxu0 0
        %921 = vmatprep.subr.bf16.mxu0 0
        %922 = vmatpush2.bf16.msra.mxu0 0
        %923 = vmatprep.mubr.bf16.mxu0 0
        %924 = vmatmul.mubr.bf16.gmra.mxu0 %v835
        %v925 = vpop.f32.mrf.mxu0
        %v926 = vadd.f32 0.0, %v925
        %v927 = vpop.f32.mrf.mxu0
        %v928 = vpop.f32.mrf.mxu0
        %v929 = vadd.f32 0.0, %v928
        %v930 = vpop.f32.mrf.mxu0
        %931 = vmatprep.mubr.bf16.mxu0 0
        %932 = vmatmul.mubr.bf16.gmra.mxu0 %v836
        %v933 = vpop.f32.mrf.mxu0
        %v934 = vadd.f32 0.0, %v933
        %v935 = vpop.f32.mrf.mxu0
        %v936 = vpop.f32.mrf.mxu0
        %v937 = vadd.f32 0.0, %v936
        %v938 = vpop.f32.mrf.mxu0
        %939 = vmatprep.mubr.bf16.mxu0 0
        %940 = vmatmul.mubr.bf16.gmra.mxu0 %v837
        %v941 = vpop.f32.mrf.mxu0
        %v942 = vadd.f32 0.0, %v941
        %v943 = vpop.f32.mrf.mxu0
        %v944 = vpop.f32.mrf.mxu0
        %v945 = vadd.f32 0.0, %v944
        %v946 = vpop.f32.mrf.mxu0
        %947 = vmatprep.mubr.bf16.mxu0 0
        %948 = vmatmul.mubr.bf16.gmra.mxu0 %v838
        %v949 = vpop.f32.mrf.mxu0
        %v950 = vadd.f32 0.0, %v949
        %v951 = vpop.f32.mrf.mxu0
        %v952 = vpop.f32.mrf.mxu0
        %v953 = vadd.f32 0.0, %v952
        %v954 = vpop.f32.mrf.mxu0
        %955 = vdwg.mxu0
        %v956 = vadd.f32 %v649, %v926
        %v957 = vadd.f32 %v652, %v929
        %v958 = vadd.f32 %v657, %v934
        %v959 = vadd.f32 %v660, %v937
        %v960 = vadd.f32 %v665, %v942
        %v961 = vadd.f32 %v668, %v945
        %v962 = vadd.f32 %v673, %v950
        %v963 = vadd.f32 %v676, %v953
        %v964 = vld [vmem:[%s342] sm:$0xf]
        %v965 = vld [vmem:[%s342 + $0x8] sm:$0xf]
        %v966 = vld [vmem:[%s342 + $0x10] sm:$0xf]
        %v967 = vld [vmem:[%s342 + $0x18] sm:$0xf]
        %v968 = vld [vmem:[%s342 + $0x20] sm:$0xf]
        %v969 = vld [vmem:[%s342 + $0x28] sm:$0xf]
        %v970 = vld [vmem:[%s342 + $0x30] sm:$0xf]
        %v971 = vld [vmem:[%s342 + $0x38] sm:$0xf]
        %s972 = scalar_lea.vmem %s351, 192
        %v973 = vld [vmem:[%s972] sm:$0xf]
        %v974 = vld [vmem:[%s972 + $0x4] sm:$0xf]
        %v975 = vld [vmem:[%s972 + $0x8] sm:$0xf]
        %v976 = vld [vmem:[%s972 + $0xc] sm:$0xf]
        %v977 = vld [vmem:[%s972 + $0x10] sm:$0xf]
        %v978 = vld [vmem:[%s972 + $0x14] sm:$0xf]
        %v979 = vld [vmem:[%s972 + $0x18] sm:$0xf]
        %v980 = vld [vmem:[%s972 + $0x1c] sm:$0xf]
        %v981 = vld [vmem:[%s972 + $0x20] sm:$0xf]
        %v982 = vld [vmem:[%s972 + $0x24] sm:$0xf]
        %v983 = vld [vmem:[%s972 + $0x28] sm:$0xf]
        %v984 = vld [vmem:[%s972 + $0x2c] sm:$0xf]
        %v985 = vld [vmem:[%s972 + $0x30] sm:$0xf]
        %v986 = vld [vmem:[%s972 + $0x34] sm:$0xf]
        %v987 = vld [vmem:[%s972 + $0x38] sm:$0xf]
        %v988 = vld [vmem:[%s972 + $0x3c] sm:$0xf]
        %v997 = vunpack.c.l.b16 %v964
        %v998 = vunpack.c.l.b16 %v965
        %v999 = vunpack.c.l.b16 %v966
        %v1000 = vunpack.c.l.b16 %v967
        %v1001 = vunpack.c.l.b16 %v968
        %v1002 = vunpack.c.l.b16 %v969
        %v1003 = vunpack.c.l.b16 %v970
        %v1004 = vunpack.c.l.b16 %v971
        %v1005 = vpack.c.b16 %v998, %v997
        %v1006 = vpack.c.b16 %v1000, %v999
        %v1007 = vpack.c.b16 %v1002, %v1001
        %v1008 = vpack.c.b16 %v1004, %v1003
        %v1029 = vunpack.c.l.b16 %v973
        %v1030 = vunpack.c.l.b16 %v974
        %v1031 = vunpack.c.l.b16 %v975
        %v1032 = vunpack.c.l.b16 %v976
        %v1033 = vunpack.c.l.b16 %v977
        %v1034 = vunpack.c.l.b16 %v978
        %v1035 = vunpack.c.l.b16 %v979
        %v1036 = vunpack.c.l.b16 %v980
        %v1037 = vunpack.c.l.b16 %v981
        %v1038 = vunpack.c.l.b16 %v982
        %v1039 = vunpack.c.l.b16 %v983
        %v1040 = vunpack.c.l.b16 %v984
        %v1041 = vunpack.c.l.b16 %v985
        %v1042 = vunpack.c.l.b16 %v986
        %v1043 = vunpack.c.l.b16 %v987
        %v1044 = vunpack.c.l.b16 %v988
        %v1045 = vpack.c.b16 %v1030, %v1029
        %v1046 = vpack.c.b16 %v1032, %v1031
        %v1047 = vpack.c.b16 %v1034, %v1033
        %v1048 = vpack.c.b16 %v1036, %v1035
        %v1049 = vpack.c.b16 %v1038, %v1037
        %v1050 = vpack.c.b16 %v1040, %v1039
        %v1051 = vpack.c.b16 %v1042, %v1041
        %v1052 = vpack.c.b16 %v1044, %v1043
        %1061 = vmatprep.subr.bf16.mxu0 0
        %1062 = vmatpush1.bf16.msra.mxu0 %v1052
        %1063 = vmatprep.subr.bf16.mxu0 0
        %1064 = vmatpush1.bf16.msra.mxu0 %v1051
        %1065 = vmatprep.subr.bf16.mxu0 0
        %1066 = vmatpush1.bf16.msra.mxu0 %v1050
        %1067 = vmatprep.subr.bf16.mxu0 0
        %1068 = vmatpush1.bf16.msra.mxu0 %v1049
        %1069 = vmatprep.subr.bf16.mxu0 0
        %1070 = vmatpush1.bf16.msra.mxu0 %v1048
        %1071 = vmatprep.subr.bf16.mxu0 0
        %1072 = vmatpush1.bf16.msra.mxu0 %v1047
        %1073 = vmatprep.subr.bf16.mxu0 0
        %1074 = vmatpush1.bf16.msra.mxu0 %v1046
        %1075 = vmatprep.subr.bf16.mxu0 0
        %1076 = vmatpush1.bf16.msra.mxu0 %v1045
        %1077 = vmatprep.subr.bf16.mxu0 0
        %1078 = vmatpush2.bf16.msra.mxu0 0
        %1079 = vmatprep.subr.bf16.mxu0 0
        %1080 = vmatpush2.bf16.msra.mxu0 0
        %1081 = vmatprep.subr.bf16.mxu0 0
        %1082 = vmatpush2.bf16.msra.mxu0 0
        %1083 = vmatprep.subr.bf16.mxu0 0
        %1084 = vmatpush2.bf16.msra.mxu0 0
        %1085 = vmatprep.subr.bf16.mxu0 0
        %1086 = vmatpush2.bf16.msra.mxu0 0
        %1087 = vmatprep.subr.bf16.mxu0 0
        %1088 = vmatpush2.bf16.msra.mxu0 0
        %1089 = vmatprep.subr.bf16.mxu0 0
        %1090 = vmatpush2.bf16.msra.mxu0 0
        %1091 = vmatprep.subr.bf16.mxu0 0
        %1092 = vmatpush2.bf16.msra.mxu0 0
        %1093 = vmatprep.mubr.bf16.mxu0 0
        %1094 = vmatmul.mubr.bf16.gmra.mxu0 %v1005
        %v1095 = vpop.f32.mrf.mxu0
        %v1096 = vadd.f32 0.0, %v1095
        %v1097 = vpop.f32.mrf.mxu0
        %v1098 = vpop.f32.mrf.mxu0
        %v1099 = vadd.f32 0.0, %v1098
        %v1100 = vpop.f32.mrf.mxu0
        %1101 = vmatprep.mubr.bf16.mxu0 0
        %1102 = vmatmul.mubr.bf16.gmra.mxu0 %v1006
        %v1103 = vpop.f32.mrf.mxu0
        %v1104 = vadd.f32 0.0, %v1103
        %v1105 = vpop.f32.mrf.mxu0
        %v1106 = vpop.f32.mrf.mxu0
        %v1107 = vadd.f32 0.0, %v1106
        %v1108 = vpop.f32.mrf.mxu0
        %1109 = vmatprep.mubr.bf16.mxu0 0
        %1110 = vmatmul.mubr.bf16.gmra.mxu0 %v1007
        %v1111 = vpop.f32.mrf.mxu0
        %v1112 = vadd.f32 0.0, %v1111
        %v1113 = vpop.f32.mrf.mxu0
        %v1114 = vpop.f32.mrf.mxu0
        %v1115 = vadd.f32 0.0, %v1114
        %v1116 = vpop.f32.mrf.mxu0
        %1117 = vmatprep.mubr.bf16.mxu0 0
        %1118 = vmatmul.mubr.bf16.gmra.mxu0 %v1008
        %v1119 = vpop.f32.mrf.mxu0
        %v1120 = vadd.f32 0.0, %v1119
        %v1121 = vpop.f32.mrf.mxu0
        %v1122 = vpop.f32.mrf.mxu0
        %v1123 = vadd.f32 0.0, %v1122
        %v1124 = vpop.f32.mrf.mxu0
        %1125 = vdwg.mxu0
        %v1126 = vadd.f32 %v956, %v1096
        %v1127 = vadd.f32 %v957, %v1099
        %v1128 = vadd.f32 %v958, %v1104
        %v1129 = vadd.f32 %v959, %v1107
        %v1130 = vadd.f32 %v960, %v1112
        %v1131 = vadd.f32 %v961, %v1115
        %v1132 = vadd.f32 %v962, %v1120
        %v1133 = vadd.f32 %v963, %v1123
        %v1134 = vld [vmem:[%s347] sm:$0xf]
        %v1135 = vld [vmem:[%s347 + $0x8] sm:$0xf]
        %v1136 = vld [vmem:[%s347 + $0x10] sm:$0xf]
        %v1137 = vld [vmem:[%s347 + $0x18] sm:$0xf]
        %v1138 = vld [vmem:[%s347 + $0x20] sm:$0xf]
        %v1139 = vld [vmem:[%s347 + $0x28] sm:$0xf]
        %v1140 = vld [vmem:[%s347 + $0x30] sm:$0xf]
        %v1141 = vld [vmem:[%s347 + $0x38] sm:$0xf]
        %s1142 = scalar_lea.vmem %s351, 256
        %v1143 = vld [vmem:[%s1142] sm:$0xf]
        %v1144 = vld [vmem:[%s1142 + $0x4] sm:$0xf]
        %v1145 = vld [vmem:[%s1142 + $0x8] sm:$0xf]
        %v1146 = vld [vmem:[%s1142 + $0xc] sm:$0xf]
        %v1147 = vld [vmem:[%s1142 + $0x10] sm:$0xf]
        %v1148 = vld [vmem:[%s1142 + $0x14] sm:$0xf]
        %v1149 = vld [vmem:[%s1142 + $0x18] sm:$0xf]
        %v1150 = vld [vmem:[%s1142 + $0x1c] sm:$0xf]
        %v1151 = vld [vmem:[%s1142 + $0x20] sm:$0xf]
        %v1152 = vld [vmem:[%s1142 + $0x24] sm:$0xf]
        %v1153 = vld [vmem:[%s1142 + $0x28] sm:$0xf]
        %v1154 = vld [vmem:[%s1142 + $0x2c] sm:$0xf]
        %v1155 = vld [vmem:[%s1142 + $0x30] sm:$0xf]
        %v1156 = vld [vmem:[%s1142 + $0x34] sm:$0xf]
        %v1157 = vld [vmem:[%s1142 + $0x38] sm:$0xf]
        %v1158 = vld [vmem:[%s1142 + $0x3c] sm:$0xf]
        %v1167 = vunpack.c.l.b16 %v1134
        %v1168 = vunpack.c.l.b16 %v1135
        %v1169 = vunpack.c.l.b16 %v1136
        %v1170 = vunpack.c.l.b16 %v1137
        %v1171 = vunpack.c.l.b16 %v1138
        %v1172 = vunpack.c.l.b16 %v1139
        %v1173 = vunpack.c.l.b16 %v1140
        %v1174 = vunpack.c.l.b16 %v1141
        %v1175 = vpack.c.b16 %v1168, %v1167
        %v1176 = vpack.c.b16 %v1170, %v1169
        %v1177 = vpack.c.b16 %v1172, %v1171
        %v1178 = vpack.c.b16 %v1174, %v1173
        %v1199 = vunpack.c.l.b16 %v1143
        %v1200 = vunpack.c.l.b16 %v1144
        %v1201 = vunpack.c.l.b16 %v1145
        %v1202 = vunpack.c.l.b16 %v1146
        %v1203 = vunpack.c.l.b16 %v1147
        %v1204 = vunpack.c.l.b16 %v1148
        %v1205 = vunpack.c.l.b16 %v1149
        %v1206 = vunpack.c.l.b16 %v1150
        %v1207 = vunpack.c.l.b16 %v1151
        %v1208 = vunpack.c.l.b16 %v1152
        %v1209 = vunpack.c.l.b16 %v1153
        %v1210 = vunpack.c.l.b16 %v1154
        %v1211 = vunpack.c.l.b16 %v1155
        %v1212 = vunpack.c.l.b16 %v1156
        %v1213 = vunpack.c.l.b16 %v1157
        %v1214 = vunpack.c.l.b16 %v1158
        %v1215 = vpack.c.b16 %v1200, %v1199
        %v1216 = vpack.c.b16 %v1202, %v1201
        %v1217 = vpack.c.b16 %v1204, %v1203
        %v1218 = vpack.c.b16 %v1206, %v1205
        %v1219 = vpack.c.b16 %v1208, %v1207
        %v1220 = vpack.c.b16 %v1210, %v1209
        %v1221 = vpack.c.b16 %v1212, %v1211
        %v1222 = vpack.c.b16 %v1214, %v1213
        %1231 = vmatprep.subr.bf16.mxu0 0
        %1232 = vmatpush1.bf16.msra.mxu0 %v1222
        %1233 = vmatprep.subr.bf16.mxu0 0
        %1234 = vmatpush1.bf16.msra.mxu0 %v1221
        %1235 = vmatprep.subr.bf16.mxu0 0
        %1236 = vmatpush1.bf16.msra.mxu0 %v1220
        %1237 = vmatprep.subr.bf16.mxu0 0
        %1238 = vmatpush1.bf16.msra.mxu0 %v1219
        %1239 = vmatprep.subr.bf16.mxu0 0
        %1240 = vmatpush1.bf16.msra.mxu0 %v1218
        %1241 = vmatprep.subr.bf16.mxu0 0
        %1242 = vmatpush1.bf16.msra.mxu0 %v1217
        %1243 = vmatprep.subr.bf16.mxu0 0
        %1244 = vmatpush1.bf16.msra.mxu0 %v1216
        %1245 = vmatprep.subr.bf16.mxu0 0
        %1246 = vmatpush1.bf16.msra.mxu0 %v1215
        %1247 = vmatprep.subr.bf16.mxu0 0
        %1248 = vmatpush2.bf16.msra.mxu0 0
        %1249 = vmatprep.subr.bf16.mxu0 0
        %1250 = vmatpush2.bf16.msra.mxu0 0
        %1251 = vmatprep.subr.bf16.mxu0 0
        %1252 = vmatpush2.bf16.msra.mxu0 0
        %1253 = vmatprep.subr.bf16.mxu0 0
        %1254 = vmatpush2.bf16.msra.mxu0 0
        %1255 = vmatprep.subr.bf16.mxu0 0
        %1256 = vmatpush2.bf16.msra.mxu0 0
        %1257 = vmatprep.subr.bf16.mxu0 0
        %1258 = vmatpush2.bf16.msra.mxu0 0
        %1259 = vmatprep.subr.bf16.mxu0 0
        %1260 = vmatpush2.bf16.msra.mxu0 0
        %1261 = vmatprep.subr.bf16.mxu0 0
        %1262 = vmatpush2.bf16.msra.mxu0 0
        %1263 = vmatprep.mubr.bf16.mxu0 0
        %1264 = vmatmul.mubr.bf16.gmra.mxu0 %v1175
        %v1265 = vpop.f32.mrf.mxu0
        %v1266 = vadd.f32 0.0, %v1265
        %v1267 = vpop.f32.mrf.mxu0
        %v1268 = vpop.f32.mrf.mxu0
        %v1269 = vadd.f32 0.0, %v1268
        %v1270 = vpop.f32.mrf.mxu0
        %1271 = vmatprep.mubr.bf16.mxu0 0
        %1272 = vmatmul.mubr.bf16.gmra.mxu0 %v1176
        %v1273 = vpop.f32.mrf.mxu0
        %v1274 = vadd.f32 0.0, %v1273
        %v1275 = vpop.f32.mrf.mxu0
        %v1276 = vpop.f32.mrf.mxu0
        %v1277 = vadd.f32 0.0, %v1276
        %v1278 = vpop.f32.mrf.mxu0
        %1279 = vmatprep.mubr.bf16.mxu0 0
        %1280 = vmatmul.mubr.bf16.gmra.mxu0 %v1177
        %v1281 = vpop.f32.mrf.mxu0
        %v1282 = vadd.f32 0.0, %v1281
        %v1283 = vpop.f32.mrf.mxu0
        %v1284 = vpop.f32.mrf.mxu0
        %v1285 = vadd.f32 0.0, %v1284
        %v1286 = vpop.f32.mrf.mxu0
        %1287 = vmatprep.mubr.bf16.mxu0 0
        %1288 = vmatmul.mubr.bf16.gmra.mxu0 %v1178
        %v1289 = vpop.f32.mrf.mxu0
        %v1290 = vadd.f32 0.0, %v1289
        %v1291 = vpop.f32.mrf.mxu0
        %v1292 = vpop.f32.mrf.mxu0
        %v1293 = vadd.f32 0.0, %v1292
        %v1294 = vpop.f32.mrf.mxu0
        %1295 = vdwg.mxu0
        %v1296 = vadd.f32 %v1126, %v1266
        %v1297 = vadd.f32 %v1127, %v1269
        %v1298 = vadd.f32 %v1128, %v1274
        %v1299 = vadd.f32 %v1129, %v1277
        %v1300 = vadd.f32 %v1130, %v1282
        %v1301 = vadd.f32 %v1131, %v1285
        %v1302 = vadd.f32 %v1132, %v1290
        %v1303 = vadd.f32 %v1133, %v1293
        %v1304 = vld [vmem:[%s342] sm:$0xf]
        %v1305 = vld [vmem:[%s342 + $0x4] sm:$0x1]
        %v1306 = vld [vmem:[%s342 + $0x8] sm:$0xf]
        %v1307 = vld [vmem:[%s342 + $0xc] sm:$0x1]
        %v1308 = vld [vmem:[%s342 + $0x10] sm:$0xf]
        %v1309 = vld [vmem:[%s342 + $0x14] sm:$0x1]
        %v1310 = vld [vmem:[%s342 + $0x18] sm:$0xf]
        %v1311 = vld [vmem:[%s342 + $0x1c] sm:$0x1]
        %v1312 = vld [vmem:[%s342 + $0x20] sm:$0xf]
        %v1313 = vld [vmem:[%s342 + $0x24] sm:$0x1]
        %v1314 = vld [vmem:[%s342 + $0x28] sm:$0xf]
        %v1315 = vld [vmem:[%s342 + $0x2c] sm:$0x1]
        %v1316 = vld [vmem:[%s342 + $0x30] sm:$0xf]
        %v1317 = vld [vmem:[%s342 + $0x34] sm:$0x1]
        %v1318 = vld [vmem:[%s342 + $0x38] sm:$0xf]
        %v1319 = vld [vmem:[%s342 + $0x3c] sm:$0x1]
        %v1321 = vshrl.u32 %v1304, 16
        %v1323 = vrot.slane %v1321, 4
        %v1324 = vshll.u32 %v1304, 16
        %v1326 = vrot.slane %v1324, 5
        %v1327 = vor.u32 %v1323, %v1326
        %v1328 = vrot.slane %v1327, 4
        %v1330 = vshll.u32 %v1305, 16
        %v1332 = vrot.slane %v1330, 5
        %v1333 = vsel %vm697, %v1328, %v1332
        %v1335 = vshrl.u32 %v1306, 16
        %v1337 = vrot.slane %v1335, 4
        %v1338 = vshll.u32 %v1306, 16
        %v1340 = vrot.slane %v1338, 5
        %v1341 = vor.u32 %v1337, %v1340
        %v1342 = vrot.slane %v1341, 4
        %v1344 = vshll.u32 %v1307, 16
        %v1346 = vrot.slane %v1344, 5
        %v1347 = vsel %vm697, %v1342, %v1346
        %v1349 = vshrl.u32 %v1308, 16
        %v1351 = vrot.slane %v1349, 4
        %v1352 = vshll.u32 %v1308, 16
        %v1354 = vrot.slane %v1352, 5
        %v1355 = vor.u32 %v1351, %v1354
        %v1356 = vrot.slane %v1355, 4
        %v1358 = vshll.u32 %v1309, 16
        %v1360 = vrot.slane %v1358, 5
        %v1361 = vsel %vm697, %v1356, %v1360
        %v1363 = vshrl.u32 %v1310, 16
        %v1365 = vrot.slane %v1363, 4
        %v1366 = vshll.u32 %v1310, 16
        %v1368 = vrot.slane %v1366, 5
        %v1369 = vor.u32 %v1365, %v1368
        %v1370 = vrot.slane %v1369, 4
        %v1372 = vshll.u32 %v1311, 16
        %v1374 = vrot.slane %v1372, 5
        %v1375 = vsel %vm697, %v1370, %v1374
        %v1377 = vshrl.u32 %v1312, 16
        %v1379 = vrot.slane %v1377, 4
        %v1380 = vshll.u32 %v1312, 16
        %v1382 = vrot.slane %v1380, 5
        %v1383 = vor.u32 %v1379, %v1382
        %v1384 = vrot.slane %v1383, 4
        %v1386 = vshll.u32 %v1313, 16
        %v1388 = vrot.slane %v1386, 5
        %v1389 = vsel %vm697, %v1384, %v1388
        %v1391 = vshrl.u32 %v1314, 16
        %v1393 = vrot.slane %v1391, 4
        %v1394 = vshll.u32 %v1314, 16
        %v1396 = vrot.slane %v1394, 5
        %v1397 = vor.u32 %v1393, %v1396
        %v1398 = vrot.slane %v1397, 4
        %v1400 = vshll.u32 %v1315, 16
        %v1402 = vrot.slane %v1400, 5
        %v1403 = vsel %vm697, %v1398, %v1402
        %v1405 = vshrl.u32 %v1316, 16
        %v1407 = vrot.slane %v1405, 4
        %v1408 = vshll.u32 %v1316, 16
        %v1410 = vrot.slane %v1408, 5
        %v1411 = vor.u32 %v1407, %v1410
        %v1412 = vrot.slane %v1411, 4
        %v1414 = vshll.u32 %v1317, 16
        %v1416 = vrot.slane %v1414, 5
        %v1417 = vsel %vm697, %v1412, %v1416
        %v1419 = vshrl.u32 %v1318, 16
        %v1421 = vrot.slane %v1419, 4
        %v1422 = vshll.u32 %v1318, 16
        %v1424 = vrot.slane %v1422, 5
        %v1425 = vor.u32 %v1421, %v1424
        %v1426 = vrot.slane %v1425, 4
        %v1428 = vshll.u32 %v1319, 16
        %v1430 = vrot.slane %v1428, 5
        %v1431 = vsel %vm697, %v1426, %v1430
        %s1432 = scalar_lea.vmem %s351, 320
        %v1433 = vld [vmem:[%s1432] sm:$0xf]
        %v1434 = vld [vmem:[%s1432 + $0x4] sm:$0xf]
        %v1435 = vld [vmem:[%s1432 + $0x8] sm:$0xf]
        %v1436 = vld [vmem:[%s1432 + $0xc] sm:$0xf]
        %v1437 = vld [vmem:[%s1432 + $0x10] sm:$0xf]
        %v1438 = vld [vmem:[%s1432 + $0x14] sm:$0xf]
        %v1439 = vld [vmem:[%s1432 + $0x18] sm:$0xf]
        %v1440 = vld [vmem:[%s1432 + $0x1c] sm:$0xf]
        %v1441 = vld [vmem:[%s1432 + $0x20] sm:$0xf]
        %v1442 = vld [vmem:[%s1432 + $0x24] sm:$0xf]
        %v1443 = vld [vmem:[%s1432 + $0x28] sm:$0xf]
        %v1444 = vld [vmem:[%s1432 + $0x2c] sm:$0xf]
        %v1445 = vld [vmem:[%s1432 + $0x30] sm:$0xf]
        %v1446 = vld [vmem:[%s1432 + $0x34] sm:$0xf]
        %v1447 = vld [vmem:[%s1432 + $0x38] sm:$0xf]
        %v1448 = vld [vmem:[%s1432 + $0x3c] sm:$0xf]
        %v1449 = vunpack.c.l.b16 %v1333
        %v1450 = vunpack.c.l.b16 %v1347
        %v1451 = vunpack.c.l.b16 %v1361
        %v1452 = vunpack.c.l.b16 %v1375
        %v1453 = vunpack.c.l.b16 %v1389
        %v1454 = vunpack.c.l.b16 %v1403
        %v1455 = vunpack.c.l.b16 %v1417
        %v1456 = vunpack.c.l.b16 %v1431
        %v1457 = vpack.c.b16 %v1450, %v1449
        %v1458 = vpack.c.b16 %v1452, %v1451
        %v1459 = vpack.c.b16 %v1454, %v1453
        %v1460 = vpack.c.b16 %v1456, %v1455
        %v1481 = vunpack.c.l.b16 %v1433
        %v1482 = vunpack.c.l.b16 %v1434
        %v1483 = vunpack.c.l.b16 %v1435
        %v1484 = vunpack.c.l.b16 %v1436
        %v1485 = vunpack.c.l.b16 %v1437
        %v1486 = vunpack.c.l.b16 %v1438
        %v1487 = vunpack.c.l.b16 %v1439
        %v1488 = vunpack.c.l.b16 %v1440
        %v1489 = vunpack.c.l.b16 %v1441
        %v1490 = vunpack.c.l.b16 %v1442
        %v1491 = vunpack.c.l.b16 %v1443
        %v1492 = vunpack.c.l.b16 %v1444
        %v1493 = vunpack.c.l.b16 %v1445
        %v1494 = vunpack.c.l.b16 %v1446
        %v1495 = vunpack.c.l.b16 %v1447
        %v1496 = vunpack.c.l.b16 %v1448
        %v1497 = vpack.c.b16 %v1482, %v1481
        %v1498 = vpack.c.b16 %v1484, %v1483
        %v1499 = vpack.c.b16 %v1486, %v1485
        %v1500 = vpack.c.b16 %v1488, %v1487
        %v1501 = vpack.c.b16 %v1490, %v1489
        %v1502 = vpack.c.b16 %v1492, %v1491
        %v1503 = vpack.c.b16 %v1494, %v1493
        %v1504 = vpack.c.b16 %v1496, %v1495
        %1513 = vmatprep.subr.bf16.mxu0 0
        %1514 = vmatpush1.bf16.msra.mxu0 %v1504
        %1515 = vmatprep.subr.bf16.mxu0 0
        %1516 = vmatpush1.bf16.msra.mxu0 %v1503
        %1517 = vmatprep.subr.bf16.mxu0 0
        %1518 = vmatpush1.bf16.msra.mxu0 %v1502
        %1519 = vmatprep.subr.bf16.mxu0 0
        %1520 = vmatpush1.bf16.msra.mxu0 %v1501
        %1521 = vmatprep.subr.bf16.mxu0 0
        %1522 = vmatpush1.bf16.msra.mxu0 %v1500
        %1523 = vmatprep.subr.bf16.mxu0 0
        %1524 = vmatpush1.bf16.msra.mxu0 %v1499
        %1525 = vmatprep.subr.bf16.mxu0 0
        %1526 = vmatpush1.bf16.msra.mxu0 %v1498
        %1527 = vmatprep.subr.bf16.mxu0 0
        %1528 = vmatpush1.bf16.msra.mxu0 %v1497
        %1529 = vmatprep.subr.bf16.mxu0 0
        %1530 = vmatpush2.bf16.msra.mxu0 0
        %1531 = vmatprep.subr.bf16.mxu0 0
        %1532 = vmatpush2.bf16.msra.mxu0 0
        %1533 = vmatprep.subr.bf16.mxu0 0
        %1534 = vmatpush2.bf16.msra.mxu0 0
        %1535 = vmatprep.subr.bf16.mxu0 0
        %1536 = vmatpush2.bf16.msra.mxu0 0
        %1537 = vmatprep.subr.bf16.mxu0 0
        %1538 = vmatpush2.bf16.msra.mxu0 0
        %1539 = vmatprep.subr.bf16.mxu0 0
        %1540 = vmatpush2.bf16.msra.mxu0 0
        %1541 = vmatprep.subr.bf16.mxu0 0
        %1542 = vmatpush2.bf16.msra.mxu0 0
        %1543 = vmatprep.subr.bf16.mxu0 0
        %1544 = vmatpush2.bf16.msra.mxu0 0
        %1545 = vmatprep.mubr.bf16.mxu0 0
        %1546 = vmatmul.mubr.bf16.gmra.mxu0 %v1457
        %v1547 = vpop.f32.mrf.mxu0
        %v1548 = vadd.f32 0.0, %v1547
        %v1549 = vpop.f32.mrf.mxu0
        %v1550 = vpop.f32.mrf.mxu0
        %v1551 = vadd.f32 0.0, %v1550
        %v1552 = vpop.f32.mrf.mxu0
        %1553 = vmatprep.mubr.bf16.mxu0 0
        %1554 = vmatmul.mubr.bf16.gmra.mxu0 %v1458
        %v1555 = vpop.f32.mrf.mxu0
        %v1556 = vadd.f32 0.0, %v1555
        %v1557 = vpop.f32.mrf.mxu0
        %v1558 = vpop.f32.mrf.mxu0
        %v1559 = vadd.f32 0.0, %v1558
        %v1560 = vpop.f32.mrf.mxu0
        %1561 = vmatprep.mubr.bf16.mxu0 0
        %1562 = vmatmul.mubr.bf16.gmra.mxu0 %v1459
        %v1563 = vpop.f32.mrf.mxu0
        %v1564 = vadd.f32 0.0, %v1563
        %v1565 = vpop.f32.mrf.mxu0
        %v1566 = vpop.f32.mrf.mxu0
        %v1567 = vadd.f32 0.0, %v1566
        %v1568 = vpop.f32.mrf.mxu0
        %1569 = vmatprep.mubr.bf16.mxu0 0
        %1570 = vmatmul.mubr.bf16.gmra.mxu0 %v1460
        %v1571 = vpop.f32.mrf.mxu0
        %v1572 = vadd.f32 0.0, %v1571
        %v1573 = vpop.f32.mrf.mxu0
        %v1574 = vpop.f32.mrf.mxu0
        %v1575 = vadd.f32 0.0, %v1574
        %v1576 = vpop.f32.mrf.mxu0
        %1577 = vdwg.mxu0
        %v1578 = vadd.f32 %v1296, %v1548
        %v1579 = vadd.f32 %v1297, %v1551
        %v1580 = vadd.f32 %v1298, %v1556
        %v1581 = vadd.f32 %v1299, %v1559
        %v1582 = vadd.f32 %v1300, %v1564
        %v1583 = vadd.f32 %v1301, %v1567
        %v1584 = vadd.f32 %v1302, %v1572
        %v1585 = vadd.f32 %v1303, %v1575
        %s1586 = scalar_lea.vmem %s332, 8
        %v1587 = vld [vmem:[%s1586] sm:$0xf]
        %v1588 = vld [vmem:[%s1586 + $0x8] sm:$0xf]
        %v1589 = vld [vmem:[%s1586 + $0x10] sm:$0xf]
        %v1590 = vld [vmem:[%s1586 + $0x18] sm:$0xf]
        %v1591 = vld [vmem:[%s1586 + $0x20] sm:$0xf]
        %v1592 = vld [vmem:[%s1586 + $0x28] sm:$0xf]
        %v1593 = vld [vmem:[%s1586 + $0x30] sm:$0xf]
        %v1594 = vld [vmem:[%s1586 + $0x38] sm:$0xf]
        %s1595 = scalar_lea.vmem %s351, 384
        %v1596 = vld [vmem:[%s1595] sm:$0xf]
        %v1597 = vld [vmem:[%s1595 + $0x4] sm:$0xf]
        %v1598 = vld [vmem:[%s1595 + $0x8] sm:$0xf]
        %v1599 = vld [vmem:[%s1595 + $0xc] sm:$0xf]
        %v1600 = vld [vmem:[%s1595 + $0x10] sm:$0xf]
        %v1601 = vld [vmem:[%s1595 + $0x14] sm:$0xf]
        %v1602 = vld [vmem:[%s1595 + $0x18] sm:$0xf]
        %v1603 = vld [vmem:[%s1595 + $0x1c] sm:$0xf]
        %v1604 = vld [vmem:[%s1595 + $0x20] sm:$0xf]
        %v1605 = vld [vmem:[%s1595 + $0x24] sm:$0xf]
        %v1606 = vld [vmem:[%s1595 + $0x28] sm:$0xf]
        %v1607 = vld [vmem:[%s1595 + $0x2c] sm:$0xf]
        %v1608 = vld [vmem:[%s1595 + $0x30] sm:$0xf]
        %v1609 = vld [vmem:[%s1595 + $0x34] sm:$0xf]
        %v1610 = vld [vmem:[%s1595 + $0x38] sm:$0xf]
        %v1611 = vld [vmem:[%s1595 + $0x3c] sm:$0xf]
        %v1620 = vunpack.c.l.b16 %v1587
        %v1621 = vunpack.c.l.b16 %v1588
        %v1622 = vunpack.c.l.b16 %v1589
        %v1623 = vunpack.c.l.b16 %v1590
        %v1624 = vunpack.c.l.b16 %v1591
        %v1625 = vunpack.c.l.b16 %v1592
        %v1626 = vunpack.c.l.b16 %v1593
        %v1627 = vunpack.c.l.b16 %v1594
        %v1628 = vpack.c.b16 %v1621, %v1620
        %v1629 = vpack.c.b16 %v1623, %v1622
        %v1630 = vpack.c.b16 %v1625, %v1624
        %v1631 = vpack.c.b16 %v1627, %v1626
        %v1652 = vunpack.c.l.b16 %v1596
        %v1653 = vunpack.c.l.b16 %v1597
        %v1654 = vunpack.c.l.b16 %v1598
        %v1655 = vunpack.c.l.b16 %v1599
        %v1656 = vunpack.c.l.b16 %v1600
        %v1657 = vunpack.c.l.b16 %v1601
        %v1658 = vunpack.c.l.b16 %v1602
        %v1659 = vunpack.c.l.b16 %v1603
        %v1660 = vunpack.c.l.b16 %v1604
        %v1661 = vunpack.c.l.b16 %v1605
        %v1662 = vunpack.c.l.b16 %v1606
        %v1663 = vunpack.c.l.b16 %v1607
        %v1664 = vunpack.c.l.b16 %v1608
        %v1665 = vunpack.c.l.b16 %v1609
        %v1666 = vunpack.c.l.b16 %v1610
        %v1667 = vunpack.c.l.b16 %v1611
        %v1668 = vpack.c.b16 %v1653, %v1652
        %v1669 = vpack.c.b16 %v1655, %v1654
        %v1670 = vpack.c.b16 %v1657, %v1656
        %v1671 = vpack.c.b16 %v1659, %v1658
        %v1672 = vpack.c.b16 %v1661, %v1660
        %v1673 = vpack.c.b16 %v1663, %v1662
        %v1674 = vpack.c.b16 %v1665, %v1664
        %v1675 = vpack.c.b16 %v1667, %v1666
        %1684 = vmatprep.subr.bf16.mxu0 0
        %1685 = vmatpush1.bf16.msra.mxu0 %v1675
        %1686 = vmatprep.subr.bf16.mxu0 0
        %1687 = vmatpush1.bf16.msra.mxu0 %v1674
        %1688 = vmatprep.subr.bf16.mxu0 0
        %1689 = vmatpush1.bf16.msra.mxu0 %v1673
        %1690 = vmatprep.subr.bf16.mxu0 0
        %1691 = vmatpush1.bf16.msra.mxu0 %v1672
        %1692 = vmatprep.subr.bf16.mxu0 0
        %1693 = vmatpush1.bf16.msra.mxu0 %v1671
        %1694 = vmatprep.subr.bf16.mxu0 0
        %1695 = vmatpush1.bf16.msra.mxu0 %v1670
        %1696 = vmatprep.subr.bf16.mxu0 0
        %1697 = vmatpush1.bf16.msra.mxu0 %v1669
        %1698 = vmatprep.subr.bf16.mxu0 0
        %1699 = vmatpush1.bf16.msra.mxu0 %v1668
        %1700 = vmatprep.subr.bf16.mxu0 0
        %1701 = vmatpush2.bf16.msra.mxu0 0
        %1702 = vmatprep.subr.bf16.mxu0 0
        %1703 = vmatpush2.bf16.msra.mxu0 0
        %1704 = vmatprep.subr.bf16.mxu0 0
        %1705 = vmatpush2.bf16.msra.mxu0 0
        %1706 = vmatprep.subr.bf16.mxu0 0
        %1707 = vmatpush2.bf16.msra.mxu0 0
        %1708 = vmatprep.subr.bf16.mxu0 0
        %1709 = vmatpush2.bf16.msra.mxu0 0
        %1710 = vmatprep.subr.bf16.mxu0 0
        %1711 = vmatpush2.bf16.msra.mxu0 0
        %1712 = vmatprep.subr.bf16.mxu0 0
        %1713 = vmatpush2.bf16.msra.mxu0 0
        %1714 = vmatprep.subr.bf16.mxu0 0
        %1715 = vmatpush2.bf16.msra.mxu0 0
        %1716 = vmatprep.mubr.bf16.mxu0 0
        %1717 = vmatmul.mubr.bf16.gmra.mxu0 %v1628
        %v1718 = vpop.f32.mrf.mxu0
        %v1719 = vadd.f32 0.0, %v1718
        %v1720 = vpop.f32.mrf.mxu0
        %v1721 = vpop.f32.mrf.mxu0
        %v1722 = vadd.f32 0.0, %v1721
        %v1723 = vpop.f32.mrf.mxu0
        %1724 = vmatprep.mubr.bf16.mxu0 0
        %1725 = vmatmul.mubr.bf16.gmra.mxu0 %v1629
        %v1726 = vpop.f32.mrf.mxu0
        %v1727 = vadd.f32 0.0, %v1726
        %v1728 = vpop.f32.mrf.mxu0
        %v1729 = vpop.f32.mrf.mxu0
        %v1730 = vadd.f32 0.0, %v1729
        %v1731 = vpop.f32.mrf.mxu0
        %1732 = vmatprep.mubr.bf16.mxu0 0
        %1733 = vmatmul.mubr.bf16.gmra.mxu0 %v1630
        %v1734 = vpop.f32.mrf.mxu0
        %v1735 = vadd.f32 0.0, %v1734
        %v1736 = vpop.f32.mrf.mxu0
        %v1737 = vpop.f32.mrf.mxu0
        %v1738 = vadd.f32 0.0, %v1737
        %v1739 = vpop.f32.mrf.mxu0
        %1740 = vmatprep.mubr.bf16.mxu0 0
        %1741 = vmatmul.mubr.bf16.gmra.mxu0 %v1631
        %v1742 = vpop.f32.mrf.mxu0
        %v1743 = vadd.f32 0.0, %v1742
        %v1744 = vpop.f32.mrf.mxu0
        %v1745 = vpop.f32.mrf.mxu0
        %v1746 = vadd.f32 0.0, %v1745
        %v1747 = vpop.f32.mrf.mxu0
        %1748 = vdwg.mxu0
        %v1749 = vadd.f32 %v1578, %v1719
        %v1750 = vadd.f32 %v1579, %v1722
        %v1751 = vadd.f32 %v1580, %v1727
        %v1752 = vadd.f32 %v1581, %v1730
        %v1753 = vadd.f32 %v1582, %v1735
        %v1754 = vadd.f32 %v1583, %v1738
        %v1755 = vadd.f32 %v1584, %v1743
        %v1756 = vadd.f32 %v1585, %v1746
        %s1757 = scalar_lea.vmem %s337, 8
        %v1758 = vld [vmem:[%s1757] sm:$0xf]
        %v1759 = vld [vmem:[%s1757 + $0x8] sm:$0xf]
        %v1760 = vld [vmem:[%s1757 + $0x10] sm:$0xf]
        %v1761 = vld [vmem:[%s1757 + $0x18] sm:$0xf]
        %v1762 = vld [vmem:[%s1757 + $0x20] sm:$0xf]
        %v1763 = vld [vmem:[%s1757 + $0x28] sm:$0xf]
        %v1764 = vld [vmem:[%s1757 + $0x30] sm:$0xf]
        %v1765 = vld [vmem:[%s1757 + $0x38] sm:$0xf]
        %s1766 = scalar_lea.vmem %s351, 448
        %v1767 = vld [vmem:[%s1766] sm:$0xf]
        %v1768 = vld [vmem:[%s1766 + $0x4] sm:$0xf]
        %v1769 = vld [vmem:[%s1766 + $0x8] sm:$0xf]
        %v1770 = vld [vmem:[%s1766 + $0xc] sm:$0xf]
        %v1771 = vld [vmem:[%s1766 + $0x10] sm:$0xf]
        %v1772 = vld [vmem:[%s1766 + $0x14] sm:$0xf]
        %v1773 = vld [vmem:[%s1766 + $0x18] sm:$0xf]
        %v1774 = vld [vmem:[%s1766 + $0x1c] sm:$0xf]
        %v1775 = vld [vmem:[%s1766 + $0x20] sm:$0xf]
        %v1776 = vld [vmem:[%s1766 + $0x24] sm:$0xf]
        %v1777 = vld [vmem:[%s1766 + $0x28] sm:$0xf]
        %v1778 = vld [vmem:[%s1766 + $0x2c] sm:$0xf]
        %v1779 = vld [vmem:[%s1766 + $0x30] sm:$0xf]
        %v1780 = vld [vmem:[%s1766 + $0x34] sm:$0xf]
        %v1781 = vld [vmem:[%s1766 + $0x38] sm:$0xf]
        %v1782 = vld [vmem:[%s1766 + $0x3c] sm:$0xf]
        %v1791 = vunpack.c.l.b16 %v1758
        %v1792 = vunpack.c.l.b16 %v1759
        %v1793 = vunpack.c.l.b16 %v1760
        %v1794 = vunpack.c.l.b16 %v1761
        %v1795 = vunpack.c.l.b16 %v1762
        %v1796 = vunpack.c.l.b16 %v1763
        %v1797 = vunpack.c.l.b16 %v1764
        %v1798 = vunpack.c.l.b16 %v1765
        %v1799 = vpack.c.b16 %v1792, %v1791
        %v1800 = vpack.c.b16 %v1794, %v1793
        %v1801 = vpack.c.b16 %v1796, %v1795
        %v1802 = vpack.c.b16 %v1798, %v1797
        %v1823 = vunpack.c.l.b16 %v1767
        %v1824 = vunpack.c.l.b16 %v1768
        %v1825 = vunpack.c.l.b16 %v1769
        %v1826 = vunpack.c.l.b16 %v1770
        %v1827 = vunpack.c.l.b16 %v1771
        %v1828 = vunpack.c.l.b16 %v1772
        %v1829 = vunpack.c.l.b16 %v1773
        %v1830 = vunpack.c.l.b16 %v1774
        %v1831 = vunpack.c.l.b16 %v1775
        %v1832 = vunpack.c.l.b16 %v1776
        %v1833 = vunpack.c.l.b16 %v1777
        %v1834 = vunpack.c.l.b16 %v1778
        %v1835 = vunpack.c.l.b16 %v1779
        %v1836 = vunpack.c.l.b16 %v1780
        %v1837 = vunpack.c.l.b16 %v1781
        %v1838 = vunpack.c.l.b16 %v1782
        %v1839 = vpack.c.b16 %v1824, %v1823
        %v1840 = vpack.c.b16 %v1826, %v1825
        %v1841 = vpack.c.b16 %v1828, %v1827
        %v1842 = vpack.c.b16 %v1830, %v1829
        %v1843 = vpack.c.b16 %v1832, %v1831
        %v1844 = vpack.c.b16 %v1834, %v1833
        %v1845 = vpack.c.b16 %v1836, %v1835
        %v1846 = vpack.c.b16 %v1838, %v1837
        %1855 = vmatprep.subr.bf16.mxu0 0
        %1856 = vmatpush1.bf16.msra.mxu0 %v1846
        %1857 = vmatprep.subr.bf16.mxu0 0
        %1858 = vmatpush1.bf16.msra.mxu0 %v1845
        %1859 = vmatprep.subr.bf16.mxu0 0
        %1860 = vmatpush1.bf16.msra.mxu0 %v1844
        %1861 = vmatprep.subr.bf16.mxu0 0
        %1862 = vmatpush1.bf16.msra.mxu0 %v1843
        %1863 = vmatprep.subr.bf16.mxu0 0
        %1864 = vmatpush1.bf16.msra.mxu0 %v1842
        %1865 = vmatprep.subr.bf16.mxu0 0
        %1866 = vmatpush1.bf16.msra.mxu0 %v1841
        %1867 = vmatprep.subr.bf16.mxu0 0
        %1868 = vmatpush1.bf16.msra.mxu0 %v1840
        %1869 = vmatprep.subr.bf16.mxu0 0
        %1870 = vmatpush1.bf16.msra.mxu0 %v1839
        %1871 = vmatprep.subr.bf16.mxu0 0
        %1872 = vmatpush2.bf16.msra.mxu0 0
        %1873 = vmatprep.subr.bf16.mxu0 0
        %1874 = vmatpush2.bf16.msra.mxu0 0
        %1875 = vmatprep.subr.bf16.mxu0 0
        %1876 = vmatpush2.bf16.msra.mxu0 0
        %1877 = vmatprep.subr.bf16.mxu0 0
        %1878 = vmatpush2.bf16.msra.mxu0 0
        %1879 = vmatprep.subr.bf16.mxu0 0
        %1880 = vmatpush2.bf16.msra.mxu0 0
        %1881 = vmatprep.subr.bf16.mxu0 0
        %1882 = vmatpush2.bf16.msra.mxu0 0
        %1883 = vmatprep.subr.bf16.mxu0 0
        %1884 = vmatpush2.bf16.msra.mxu0 0
        %1885 = vmatprep.subr.bf16.mxu0 0
        %1886 = vmatpush2.bf16.msra.mxu0 0
        %1887 = vmatprep.mubr.bf16.mxu0 0
        %1888 = vmatmul.mubr.bf16.gmra.mxu0 %v1799
        %v1889 = vpop.f32.mrf.mxu0
        %v1890 = vadd.f32 0.0, %v1889
        %v1891 = vpop.f32.mrf.mxu0
        %v1892 = vpop.f32.mrf.mxu0
        %v1893 = vadd.f32 0.0, %v1892
        %v1894 = vpop.f32.mrf.mxu0
        %1895 = vmatprep.mubr.bf16.mxu0 0
        %1896 = vmatmul.mubr.bf16.gmra.mxu0 %v1800
        %v1897 = vpop.f32.mrf.mxu0
        %v1898 = vadd.f32 0.0, %v1897
        %v1899 = vpop.f32.mrf.mxu0
        %v1900 = vpop.f32.mrf.mxu0
        %v1901 = vadd.f32 0.0, %v1900
        %v1902 = vpop.f32.mrf.mxu0
        %1903 = vmatprep.mubr.bf16.mxu0 0
        %1904 = vmatmul.mubr.bf16.gmra.mxu0 %v1801
        %v1905 = vpop.f32.mrf.mxu0
        %v1906 = vadd.f32 0.0, %v1905
        %v1907 = vpop.f32.mrf.mxu0
        %v1908 = vpop.f32.mrf.mxu0
        %v1909 = vadd.f32 0.0, %v1908
        %v1910 = vpop.f32.mrf.mxu0
        %1911 = vmatprep.mubr.bf16.mxu0 0
        %1912 = vmatmul.mubr.bf16.gmra.mxu0 %v1802
        %v1913 = vpop.f32.mrf.mxu0
        %v1914 = vadd.f32 0.0, %v1913
        %v1915 = vpop.f32.mrf.mxu0
        %v1916 = vpop.f32.mrf.mxu0
        %v1917 = vadd.f32 0.0, %v1916
        %v1918 = vpop.f32.mrf.mxu0
        %1919 = vdwg.mxu0
        %v1920 = vadd.f32 %v1749, %v1890
        %v1921 = vadd.f32 %v1750, %v1893
        %v1922 = vadd.f32 %v1751, %v1898
        %v1923 = vadd.f32 %v1752, %v1901
        %v1924 = vadd.f32 %v1753, %v1906
        %v1925 = vadd.f32 %v1754, %v1909
        %v1926 = vadd.f32 %v1755, %v1914
        %v1927 = vadd.f32 %v1756, %v1917
        %v1928 = vld [vmem:[%s1586] sm:$0xf]
        %v1929 = vld [vmem:[%s1586 + $0x4] sm:$0x1]
        %v1930 = vld [vmem:[%s1586 + $0x8] sm:$0xf]
        %v1931 = vld [vmem:[%s1586 + $0xc] sm:$0x1]
        %v1932 = vld [vmem:[%s1586 + $0x10] sm:$0xf]
        %v1933 = vld [vmem:[%s1586 + $0x14] sm:$0x1]
        %v1934 = vld [vmem:[%s1586 + $0x18] sm:$0xf]
        %v1935 = vld [vmem:[%s1586 + $0x1c] sm:$0x1]
        %v1936 = vld [vmem:[%s1586 + $0x20] sm:$0xf]
        %v1937 = vld [vmem:[%s1586 + $0x24] sm:$0x1]
        %v1938 = vld [vmem:[%s1586 + $0x28] sm:$0xf]
        %v1939 = vld [vmem:[%s1586 + $0x2c] sm:$0x1]
        %v1940 = vld [vmem:[%s1586 + $0x30] sm:$0xf]
        %v1941 = vld [vmem:[%s1586 + $0x34] sm:$0x1]
        %v1942 = vld [vmem:[%s1586 + $0x38] sm:$0xf]
        %v1943 = vld [vmem:[%s1586 + $0x3c] sm:$0x1]
        %v1945 = vshrl.u32 %v1928, 16
        %v1947 = vrot.slane %v1945, 4
        %v1948 = vshll.u32 %v1928, 16
        %v1950 = vrot.slane %v1948, 5
        %v1951 = vor.u32 %v1947, %v1950
        %v1952 = vrot.slane %v1951, 4
        %v1954 = vshll.u32 %v1929, 16
        %v1956 = vrot.slane %v1954, 5
        %v1957 = vsel %vm697, %v1952, %v1956
        %v1959 = vshrl.u32 %v1930, 16
        %v1961 = vrot.slane %v1959, 4
        %v1962 = vshll.u32 %v1930, 16
        %v1964 = vrot.slane %v1962, 5
        %v1965 = vor.u32 %v1961, %v1964
        %v1966 = vrot.slane %v1965, 4
        %v1968 = vshll.u32 %v1931, 16
        %v1970 = vrot.slane %v1968, 5
        %v1971 = vsel %vm697, %v1966, %v1970
        %v1973 = vshrl.u32 %v1932, 16
        %v1975 = vrot.slane %v1973, 4
        %v1976 = vshll.u32 %v1932, 16
        %v1978 = vrot.slane %v1976, 5
        %v1979 = vor.u32 %v1975, %v1978
        %v1980 = vrot.slane %v1979, 4
        %v1982 = vshll.u32 %v1933, 16
        %v1984 = vrot.slane %v1982, 5
        %v1985 = vsel %vm697, %v1980, %v1984
        %v1987 = vshrl.u32 %v1934, 16
        %v1989 = vrot.slane %v1987, 4
        %v1990 = vshll.u32 %v1934, 16
        %v1992 = vrot.slane %v1990, 5
        %v1993 = vor.u32 %v1989, %v1992
        %v1994 = vrot.slane %v1993, 4
        %v1996 = vshll.u32 %v1935, 16
        %v1998 = vrot.slane %v1996, 5
        %v1999 = vsel %vm697, %v1994, %v1998
        %v2001 = vshrl.u32 %v1936, 16
        %v2003 = vrot.slane %v2001, 4
        %v2004 = vshll.u32 %v1936, 16
        %v2006 = vrot.slane %v2004, 5
        %v2007 = vor.u32 %v2003, %v2006
        %v2008 = vrot.slane %v2007, 4
        %v2010 = vshll.u32 %v1937, 16
        %v2012 = vrot.slane %v2010, 5
        %v2013 = vsel %vm697, %v2008, %v2012
        %v2015 = vshrl.u32 %v1938, 16
        %v2017 = vrot.slane %v2015, 4
        %v2018 = vshll.u32 %v1938, 16
        %v2020 = vrot.slane %v2018, 5
        %v2021 = vor.u32 %v2017, %v2020
        %v2022 = vrot.slane %v2021, 4
        %v2024 = vshll.u32 %v1939, 16
        %v2026 = vrot.slane %v2024, 5
        %v2027 = vsel %vm697, %v2022, %v2026
        %v2029 = vshrl.u32 %v1940, 16
        %v2031 = vrot.slane %v2029, 4
        %v2032 = vshll.u32 %v1940, 16
        %v2034 = vrot.slane %v2032, 5
        %v2035 = vor.u32 %v2031, %v2034
        %v2036 = vrot.slane %v2035, 4
        %v2038 = vshll.u32 %v1941, 16
        %v2040 = vrot.slane %v2038, 5
        %v2041 = vsel %vm697, %v2036, %v2040
        %v2043 = vshrl.u32 %v1942, 16
        %v2045 = vrot.slane %v2043, 4
        %v2046 = vshll.u32 %v1942, 16
        %v2048 = vrot.slane %v2046, 5
        %v2049 = vor.u32 %v2045, %v2048
        %v2050 = vrot.slane %v2049, 4
        %v2052 = vshll.u32 %v1943, 16
        %v2054 = vrot.slane %v2052, 5
        %v2055 = vsel %vm697, %v2050, %v2054
        %s2056 = scalar_lea.vmem %s351, 512
        %v2057 = vld [vmem:[%s2056] sm:$0xf]
        %v2058 = vld [vmem:[%s2056 + $0x4] sm:$0xf]
        %v2059 = vld [vmem:[%s2056 + $0x8] sm:$0xf]
        %v2060 = vld [vmem:[%s2056 + $0xc] sm:$0xf]
        %v2061 = vld [vmem:[%s2056 + $0x10] sm:$0xf]
        %v2062 = vld [vmem:[%s2056 + $0x14] sm:$0xf]
        %v2063 = vld [vmem:[%s2056 + $0x18] sm:$0xf]
        %v2064 = vld [vmem:[%s2056 + $0x1c] sm:$0xf]
        %v2065 = vld [vmem:[%s2056 + $0x20] sm:$0xf]
        %v2066 = vld [vmem:[%s2056 + $0x24] sm:$0xf]
        %v2067 = vld [vmem:[%s2056 + $0x28] sm:$0xf]
        %v2068 = vld [vmem:[%s2056 + $0x2c] sm:$0xf]
        %v2069 = vld [vmem:[%s2056 + $0x30] sm:$0xf]
        %v2070 = vld [vmem:[%s2056 + $0x34] sm:$0xf]
        %v2071 = vld [vmem:[%s2056 + $0x38] sm:$0xf]
        %v2072 = vld [vmem:[%s2056 + $0x3c] sm:$0xf]
        %v2073 = vunpack.c.l.b16 %v1957
        %v2074 = vunpack.c.l.b16 %v1971
        %v2075 = vunpack.c.l.b16 %v1985
        %v2076 = vunpack.c.l.b16 %v1999
        %v2077 = vunpack.c.l.b16 %v2013
        %v2078 = vunpack.c.l.b16 %v2027
        %v2079 = vunpack.c.l.b16 %v2041
        %v2080 = vunpack.c.l.b16 %v2055
        %v2081 = vpack.c.b16 %v2074, %v2073
        %v2082 = vpack.c.b16 %v2076, %v2075
        %v2083 = vpack.c.b16 %v2078, %v2077
        %v2084 = vpack.c.b16 %v2080, %v2079
        %v2105 = vunpack.c.l.b16 %v2057
        %v2106 = vunpack.c.l.b16 %v2058
        %v2107 = vunpack.c.l.b16 %v2059
        %v2108 = vunpack.c.l.b16 %v2060
        %v2109 = vunpack.c.l.b16 %v2061
        %v2110 = vunpack.c.l.b16 %v2062
        %v2111 = vunpack.c.l.b16 %v2063
        %v2112 = vunpack.c.l.b16 %v2064
        %v2113 = vunpack.c.l.b16 %v2065
        %v2114 = vunpack.c.l.b16 %v2066
        %v2115 = vunpack.c.l.b16 %v2067
        %v2116 = vunpack.c.l.b16 %v2068
        %v2117 = vunpack.c.l.b16 %v2069
        %v2118 = vunpack.c.l.b16 %v2070
        %v2119 = vunpack.c.l.b16 %v2071
        %v2120 = vunpack.c.l.b16 %v2072
        %v2121 = vpack.c.b16 %v2106, %v2105
        %v2122 = vpack.c.b16 %v2108, %v2107
        %v2123 = vpack.c.b16 %v2110, %v2109
        %v2124 = vpack.c.b16 %v2112, %v2111
        %v2125 = vpack.c.b16 %v2114, %v2113
        %v2126 = vpack.c.b16 %v2116, %v2115
        %v2127 = vpack.c.b16 %v2118, %v2117
        %v2128 = vpack.c.b16 %v2120, %v2119
        %2137 = vmatprep.subr.bf16.mxu0 0
        %2138 = vmatpush1.bf16.msra.mxu0 %v2128
        %2139 = vmatprep.subr.bf16.mxu0 0
        %2140 = vmatpush1.bf16.msra.mxu0 %v2127
        %2141 = vmatprep.subr.bf16.mxu0 0
        %2142 = vmatpush1.bf16.msra.mxu0 %v2126
        %2143 = vmatprep.subr.bf16.mxu0 0
        %2144 = vmatpush1.bf16.msra.mxu0 %v2125
        %2145 = vmatprep.subr.bf16.mxu0 0
        %2146 = vmatpush1.bf16.msra.mxu0 %v2124
        %2147 = vmatprep.subr.bf16.mxu0 0
        %2148 = vmatpush1.bf16.msra.mxu0 %v2123
        %2149 = vmatprep.subr.bf16.mxu0 0
        %2150 = vmatpush1.bf16.msra.mxu0 %v2122
        %2151 = vmatprep.subr.bf16.mxu0 0
        %2152 = vmatpush1.bf16.msra.mxu0 %v2121
        %2153 = vmatprep.subr.bf16.mxu0 0
        %2154 = vmatpush2.bf16.msra.mxu0 0
        %2155 = vmatprep.subr.bf16.mxu0 0
        %2156 = vmatpush2.bf16.msra.mxu0 0
        %2157 = vmatprep.subr.bf16.mxu0 0
        %2158 = vmatpush2.bf16.msra.mxu0 0
        %2159 = vmatprep.subr.bf16.mxu0 0
        %2160 = vmatpush2.bf16.msra.mxu0 0
        %2161 = vmatprep.subr.bf16.mxu0 0
        %2162 = vmatpush2.bf16.msra.mxu0 0
        %2163 = vmatprep.subr.bf16.mxu0 0
        %2164 = vmatpush2.bf16.msra.mxu0 0
        %2165 = vmatprep.subr.bf16.mxu0 0
        %2166 = vmatpush2.bf16.msra.mxu0 0
        %2167 = vmatprep.subr.bf16.mxu0 0
        %2168 = vmatpush2.bf16.msra.mxu0 0
        %2169 = vmatprep.mubr.bf16.mxu0 0
        %2170 = vmatmul.mubr.bf16.gmra.mxu0 %v2081
        %v2171 = vpop.f32.mrf.mxu0
        %v2172 = vadd.f32 0.0, %v2171
        %v2173 = vpop.f32.mrf.mxu0
        %v2174 = vpop.f32.mrf.mxu0
        %v2175 = vadd.f32 0.0, %v2174
        %v2176 = vpop.f32.mrf.mxu0
        %2177 = vmatprep.mubr.bf16.mxu0 0
        %2178 = vmatmul.mubr.bf16.gmra.mxu0 %v2082
        %v2179 = vpop.f32.mrf.mxu0
        %v2180 = vadd.f32 0.0, %v2179
        %v2181 = vpop.f32.mrf.mxu0
        %v2182 = vpop.f32.mrf.mxu0
        %v2183 = vadd.f32 0.0, %v2182
        %v2184 = vpop.f32.mrf.mxu0
        %2185 = vmatprep.mubr.bf16.mxu0 0
        %2186 = vmatmul.mubr.bf16.gmra.mxu0 %v2083
        %v2187 = vpop.f32.mrf.mxu0
        %v2188 = vadd.f32 0.0, %v2187
        %v2189 = vpop.f32.mrf.mxu0
        %v2190 = vpop.f32.mrf.mxu0
        %v2191 = vadd.f32 0.0, %v2190
        %v2192 = vpop.f32.mrf.mxu0
        %2193 = vmatprep.mubr.bf16.mxu0 0
        %2194 = vmatmul.mubr.bf16.gmra.mxu0 %v2084
        %v2195 = vpop.f32.mrf.mxu0
        %v2196 = vadd.f32 0.0, %v2195
        %v2197 = vpop.f32.mrf.mxu0
        %v2198 = vpop.f32.mrf.mxu0
        %v2199 = vadd.f32 0.0, %v2198
        %v2200 = vpop.f32.mrf.mxu0
        %2201 = vdwg.mxu0
        %v2202 = vadd.f32 %v1920, %v2172
        %v2203 = vadd.f32 %v1921, %v2175
        %v2204 = vadd.f32 %v1922, %v2180
        %v2205 = vadd.f32 %v1923, %v2183
        %v2206 = vadd.f32 %v1924, %v2188
        %v2207 = vadd.f32 %v1925, %v2191
        %v2208 = vadd.f32 %v1926, %v2196
        %v2209 = vadd.f32 %v1927, %v2199
        %v2210 = vld [vmem:[%s354] sm:$0x1]
        %v2212 = vlaneseq
        %v2213 = vshrl.u32 %v2212, 7
        %v2214 = vsub.s32 0, %v2213
        %v2215 = vrot.slane %v2210, %v2214
        %v2217 = vadd.f32 %v2202, %v2215
        %v2218 = vadd.f32 %v2203, %v2215
        %v2219 = vadd.f32 %v2204, %v2215
        %v2220 = vadd.f32 %v2205, %v2215
        %v2221 = vadd.f32 %v2206, %v2215
        %v2222 = vadd.f32 %v2207, %v2215
        %v2223 = vadd.f32 %v2208, %v2215
        %v2224 = vadd.f32 %v2209, %v2215
        %2225 = vst [vmem:[%s327] sm:$0xff] %v2217
        %2226 = vst [vmem:[%s327 + $0x8] sm:$0xff] %v2218
        %2227 = vst [vmem:[%s327 + $0x10] sm:$0xff] %v2219
        %2228 = vst [vmem:[%s327 + $0x18] sm:$0xff] %v2220
        %2229 = vst [vmem:[%s327 + $0x20] sm:$0xff] %v2221
        %2230 = vst [vmem:[%s327 + $0x28] sm:$0xff] %v2222
        %2231 = vst [vmem:[%s327 + $0x30] sm:$0xff] %v2223
        %2232 = vst [vmem:[%s327 + $0x38] sm:$0xff] %v2224
        %s2233 = sand.u32 %s198, 1
        %s2234 = scalar_lea.sflag [#allocation3], %s2233
        %s2235 = sand.u32 %s198, 1
        %s2236 = smul.addr %s2235, 64
        %s2237 = scalar_lea.vmem [#allocation2], %s2236
        // Predicated region
        $region45: #{downsample_forward.1} parent=43 // pred_check
          %p2238 = pneg %p208
        $region46: #{downsample_forward.1} parent=43 // pred_check_branch
          %2240 = sbr.rel (%p2238) target = $region48
        $region47: #{downsample_forward.1} parent=43 // pred_region
          %s2242 = ssub.s32 1024, 1024
          %2243 = vsyncadd %s2234, %s2242
          %s2244 = smul.addr %s24, 8
          %s2245 = sadd.s32 %s25, %s2244
          %s2246 = smul.addr %s2245, 128
          %s2247 = scalar_lea.hbm %s6, %s2246
          %s2248 = sshll.u32 %s2237, 4
          %s2249 = int_to_ptr.vmem [resolvable:$true] %s2248
          %2254 = dma.vmem_to_hbm [thread:$0]  %s2249, 1024, %s2247, %s2234, 128, 128, 8
        $region48: #{downsample_forward.1} parent=43 // pred_fallthru
          _
      $region44: #{downsample_forward.1} parent=5 // pred_fallthru
        _
      %p2255 = scmp.le.s32.totalorder 2, %s15
      // Predicated region
      $region49: #{downsample_forward.1} parent=5 // pred_check
        %p2256 = pneg %p2255
      $region50: #{downsample_forward.1} parent=5 // pred_check_branch
        %2258 = sbr.rel (%p2256) target = $region52
      $region51: #{downsample_forward.1} parent=5 // pred_region
        %s2259 = ssub.s32 %s15, 2
        // Predicated region
        $region53: #{downsample_forward.1} parent=51 // pred_check
          %p2260 = pneg %p214
        $region54: #{downsample_forward.1} parent=51 // pred_check_branch
          %2262 = sbr.rel (%p2260) target = $region56
        $region55: #{downsample_forward.1} parent=51 // pred_region
          %s2263 = sand.u32 %s199, 1
          %s2264 = scalar_lea.sflag [#allocation3], %s2263
          %s2265 = sand.u32 %s199, 1
          %s2266 = smul.addr %s2265, 64
          %s2267 = scalar_lea.vmem [#allocation2], %s2266
          %2268 = dma.done %s2264, 1024
        $region56: #{downsample_forward.1} parent=51 // pred_fallthru
          _
      $region52: #{downsample_forward.1} parent=5 // pred_fallthru
        _
    $region6: #{downsample_forward.1} parent=1 // loop_footer
      %s19 = sadd.s32 1, %s15
    $region7: #{downsample_forward.1} parent=1 // loop_footer_branch
      %14 = sbr.rel target = $region3
    $region8: #{downsample_forward.1} parent=1 // loop_exit
      _
    %2269 = vsyncpa [#allocation3], 1
    %s2270 = scalar_lea.sflag [#allocation3], 1
    %2271 = vsyncpa %s2270, 1

</llo_original>
